<compile_context>
chip_gen: v7x
topology: tpu7x:2x2x1
jax: 0.10.0
libtpu: 0.0.40
codegen_flags: <defaults>
</compile_context>

<pallas_src>
import jax
import jax.numpy as jnp
from jax import lax
from jax.experimental import pallas as pl
from jax.experimental.pallas import tpu as pltpu


# ----------------------------- model dims -----------------------------------
BATCH = 1          # batch_size
SEQ = 8            # seq_len  (outer_dim = BATCH * SEQ = 8)
L_TOK = BATCH * SEQ
D_MODEL = 32       # d_model
D_INNER = 64       # expand * d_model
D_STATE = 16       # SSM state size
DT_RANK = 2        # ceil(d_model / 16)
D_CONV = 4         # depthwise conv kernel size
VOCAB = 256        # vocab size (multiple of 128 -> lane-dense logits)
NUM_LAYERS = 2
EPS = 1e-5


# ----------------------------- kernel helpers --------------------------------
def _silu(v):
    return v * (1.0 / (1.0 + jnp.exp(-v)))


def _rms_scale(v):
    # RMSNorm without the gain multiply: the learned weight is folded into the
    # rows of the following projection at weight-prep time (host side).
    ms = jnp.mean(v * v, axis=-1, keepdims=True)
    return v * lax.rsqrt(ms + EPS)


# ----------------------------- fused kernel ----------------------------------
def mamba_fused_kernel(
    tokens_ref,     # (L, 1) int32
    emb_ref,        # (VOCAB, D_MODEL) f32
    w_in_ref,       # (NL, D_MODEL, 2E) f32  (norm_w folded; lanes = [x | z])
    shift_ref,      # (K*L, L) f32           (stacked causal-shift matrices)
    conv_w_ref,     # (NL, K, E) f32
    conv_b_ref,     # (NL, 1, E) f32
    w_xproj_ref,    # (NL, E, 2E) f32        (lanes = [B | C | 0 | dt_lowrank@dt_proj])
    dt_bias_ref,    # (NL, 1, E) f32
    a_t_ref,        # (NL, N, E) f32         (A pre-transposed: state on sublanes)
    d_ref,          # (NL, 1, E) f32
    out_proj_ref,   # (NL, E, D_MODEL) f32
    lm_head_ref,    # (D_MODEL, VOCAB) f32   (norm_f folded)
    logits_ref,     # (L, VOCAB) f32 output
):
    # ---- embedding gather as ONE one-hot MXU matmul (no serial scalar path).
    # Out-of-range ids match no column -> zero embedding (safe by construction).
    tok = tokens_ref[...]                                          # (L, 1) int32
    vocab_iota = lax.broadcasted_iota(jnp.int32, (L_TOK, VOCAB), 1)
    onehot = (vocab_iota == tok).astype(jnp.float32)               # (L, VOCAB)
    x = jnp.dot(onehot, emb_ref[...], preferred_element_type=jnp.float32)

    shift = shift_ref[...]                                         # (K*L, L)
    row_ids = lax.broadcasted_iota(jnp.int32, (L_TOK, 1), 0)

    for l in range(NUM_LAYERS):                                    # static unroll
        resid = x
        xn = _rms_scale(x)                                         # (L, D) f32

        # fused in_proj: one (L,D)@(D,2E) matmul, split lanes afterwards
        xz = jnp.dot(xn, w_in_ref[l], preferred_element_type=jnp.float32)
        xin = xz[:, :D_INNER]                                      # (L, E)
        z = xz[:, D_INNER:]                                        # (L, E)

        # depthwise causal conv1d: all K shifted copies of xin come from ONE
        # tiny (K*L, L)@(L, E) matmul -> tile-aligned slices, no VMEM scratch.
        shifted = jnp.dot(shift, xin, preferred_element_type=jnp.float32)
        conv_w = conv_w_ref[l]                                     # (K, E)
        acc = conv_b_ref[l]                                        # (1, E)
        for k in range(D_CONV):
            acc = acc + shifted[k * L_TOK:(k + 1) * L_TOK, :] * conv_w[k:k + 1, :]
        xc = _silu(acc)                                            # (L, E) f32

        # fused x_proj: B | C | dt all from ONE (L,E)@(E,2E) matmul
        proj = jnp.dot(xc, w_xproj_ref[l], preferred_element_type=jnp.float32)
        dt_lin = proj[:, D_INNER:] + dt_bias_ref[l]                # (L, E)
        dt_all = jnp.maximum(dt_lin, 0.0) + jnp.log1p(jnp.exp(-jnp.abs(dt_lin)))
        proj_t = proj.T                                            # (2E, L)
        bm_t = proj_t[0:D_STATE, :]                                # (N, L)
        cm_t = proj_t[D_STATE:2 * D_STATE, :]                      # (N, L)

        a_t = a_t_ref[l]                                           # (N, E)
        gate = _silu(z)                                            # (L, E)
        dtx = dt_all * xc                                          # (L, E)

        # hoist non-recurrent work (EUP exp, lane broadcasts) out of the chain;
        # the serial recurrence is left with one vector FMA per step.
        decays, us = [], []
        for t in range(L_TOK):
            dt_row = dt_all[t:t + 1, :]                            # (1, E)
            decays.append(jnp.exp(dt_row * a_t))                   # (N, E)
            us.append(dtx[t:t + 1, :] * bm_t[:, t:t + 1])          # (N, E)

        hs = []
        h = jnp.zeros((D_STATE, D_INNER), jnp.float32)
        for t in range(L_TOK):
            h = decays[t] * h + us[t]                              # (N, E)
            hs.append(h)

        # output reduction kept off the recurrence; y stays register-resident
        y_all = jnp.zeros((L_TOK, D_INNER), jnp.float32)
        for t in range(L_TOK):
            y_t = jnp.sum(hs[t] * cm_t[:, t:t + 1], axis=0, keepdims=True)
            y_all = jnp.where(row_ids == t, y_t, y_all)
        y_all = (y_all + d_ref[l] * xc) * gate                     # (L, E)

        x = jnp.dot(y_all, out_proj_ref[l],
                    preferred_element_type=jnp.float32) + resid    # fused residual

    # ---- final RMSNorm (gain folded into lm_head) + lane-dense logits store
    xf = _rms_scale(x)
    logits_ref[...] = jnp.dot(xf, lm_head_ref[...],
                              preferred_element_type=jnp.float32)


# ----------------------------- wrapper ----------------------------------------
def mamba_forward(tokens, params):
    B, S = tokens.shape
    L = B * S
    assert L == L_TOK
    n_inputs = 12
    logits = pl.pallas_call(
        mamba_fused_kernel,
        out_shape=jax.ShapeDtypeStruct((L, VOCAB), jnp.float32),
        in_specs=[pl.BlockSpec(memory_space=pltpu.MemorySpace.VMEM)] * n_inputs,
        out_specs=pl.BlockSpec(memory_space=pltpu.MemorySpace.VMEM),
    )(
        tokens.reshape(L, 1).astype(jnp.int32),
        params["embedding"],
        params["w_in"],
        params["conv_shift"],
        params["conv_w"],
        params["conv_b"],
        params["w_xproj"],
        params["dt_bias"],
        params["A_T"],
        params["D"],
        params["out_proj"],
        params["lm_head"],
    )
    return logits.reshape(B, S, VOCAB)


# ----------------------------- params -----------------------------------------
def init_params(key):
    def nrm(k, shape, scale=0.02):
        return scale * jax.random.normal(k, shape, jnp.float32)

    keys = jax.random.split(key, 2 + NUM_LAYERS)
    names = ("w_in", "conv_w", "conv_b", "w_xproj", "dt_bias", "A_T", "D",
             "out_proj")
    per_layer = {n: [] for n in names}

    for i in range(NUM_LAYERS):
        lk = jax.random.split(keys[2 + i], 8)

        norm_w = jnp.ones((D_MODEL,), jnp.float32)          # RMSNorm gain
        in_proj = nrm(lk[0], (D_MODEL, 2 * D_INNER))         # [x | z] fused
        # fold the RMSNorm gain into the fused in_proj rows (host side, free)
        per_layer["w_in"].append(in_proj * norm_w[:, None])

        per_layer["conv_w"].append(nrm(lk[1], (D_CONV, D_INNER), scale=0.1))
        per_layer["conv_b"].append(
            0.1 * jax.random.normal(lk[2], (1, D_INNER), jnp.float32))

        x_proj = nrm(lk[3], (D_INNER, DT_RANK + 2 * D_STATE))   # [dt | B | C]
        dt_proj = nrm(lk[4], (DT_RANK, D_INNER), scale=0.1)
        # pack [B | C | zeros | (x_proj_dt @ dt_proj)] into one (E, 2E) matrix
        w_xp = jnp.zeros((D_INNER, 2 * D_INNER), jnp.float32)
        w_xp = w_xp.at[:, 0:D_STATE].set(x_proj[:, DT_RANK:DT_RANK + D_STATE])
        w_xp = w_xp.at[:, D_STATE:2 * D_STATE].set(x_proj[:, DT_RANK + D_STATE:])
        w_xp = w_xp.at[:, D_INNER:].set(jnp.dot(x_proj[:, :DT_RANK], dt_proj))
        per_layer["w_xproj"].append(w_xp)
        per_layer["dt_bias"].append(
            0.1 * jax.random.normal(lk[5], (1, D_INNER), jnp.float32))

        A_log = jnp.log(jnp.tile(jnp.arange(1, D_STATE + 1, dtype=jnp.float32),
                                 (D_INNER, 1)))               # (E, N)
        per_layer["A_T"].append((-jnp.exp(A_log)).T)          # (N, E)
        per_layer["D"].append(jnp.ones((1, D_INNER), jnp.float32))
        per_layer["out_proj"].append(nrm(lk[6], (D_INNER, D_MODEL)))

    params = {n: jnp.stack(v, axis=0) for n, v in per_layer.items()}
    params["embedding"] = nrm(keys[0], (VOCAB, D_MODEL))
    # lm_head.weight stored pre-transposed (d_model, vocab); final RMSNorm gain
    # (norm_f, ones at init) folded into its rows.
    norm_f = jnp.ones((D_MODEL,), jnp.float32)
    params["lm_head"] = nrm(keys[1], (D_MODEL, VOCAB)) * norm_f[:, None]

    # stacked causal shift matrices: block k shifts rows down by (D_CONV-1-k)
    shift = jnp.zeros((D_CONV * L_TOK, L_TOK), jnp.float32)
    for k in range(D_CONV):
        s = D_CONV - 1 - k
        for t in range(s, L_TOK):
            shift = shift.at[k * L_TOK + t, t - s].set(1.0)
    params["conv_shift"] = shift
    return params


# ----------------------------- main --------------------------------------------
if __name__ == "__main__":
    key = jax.random.PRNGKey(0)
    pkey, tkey = jax.random.split(key)
    params = init_params(pkey)
    tokens = jax.random.randint(tkey, (BATCH, SEQ), 0, VOCAB, dtype=jnp.int32)

    fwd = jax.jit(mamba_forward)
    logits = fwd(tokens, params)
    jax.block_until_ready(logits)

    assert logits.shape == (BATCH, SEQ, VOCAB)
    assert logits.dtype == jnp.float32
    assert bool(jnp.all(jnp.isfinite(logits)))
    print("KERNEL_OK")
</pallas_src>

<mosaic_0001>
module attributes {stable_mosaic.version = 11 : i64} {
  func.func @mamba_fused_kernel(%arg0: memref<8x1xi32, #tpu.memory_space<vmem>>, %arg1: memref<256x32xf32, #tpu.memory_space<vmem>>, %arg2: memref<2x32x128xf32, #tpu.memory_space<vmem>>, %arg3: memref<32x8xf32, #tpu.memory_space<vmem>>, %arg4: memref<2x4x64xf32, #tpu.memory_space<vmem>>, %arg5: memref<2x1x64xf32, #tpu.memory_space<vmem>>, %arg6: memref<2x64x128xf32, #tpu.memory_space<vmem>>, %arg7: memref<2x1x64xf32, #tpu.memory_space<vmem>>, %arg8: memref<2x16x64xf32, #tpu.memory_space<vmem>>, %arg9: memref<2x1x64xf32, #tpu.memory_space<vmem>>, %arg10: memref<2x64x32xf32, #tpu.memory_space<vmem>>, %arg11: memref<32x256xf32, #tpu.memory_space<vmem>>, %arg12: memref<8x256xf32, #tpu.memory_space<vmem>>) attributes {dimension_semantics = [], scalar_prefetch = 0 : i64, scratch_operands = 0 : i64, tpu.core_type = #tpu.core_type<tc>} {
    %c0 = arith.constant 0 : index
    %c0_0 = arith.constant 0 : index
    %0 = vector.load %arg0[%c0, %c0_0] : memref<8x1xi32, #tpu.memory_space<vmem>>, vector<8x1xi32>
    %1 = tpu.iota {dimensions = array<i32: 1>} : vector<8x256xi32>
    %2 = vector.broadcast %0 : vector<8x1xi32> to vector<8x256xi32>
    %3 = arith.cmpi eq, %1, %2 : vector<8x256xi32>
    %4 = arith.extui %3 : vector<8x256xi1> to vector<8x256xi32>
    %5 = arith.sitofp %4 : vector<8x256xi32> to vector<8x256xf32>
    %c0_1 = arith.constant 0 : index
    %c0_2 = arith.constant 0 : index
    %6 = vector.load %arg1[%c0_1, %c0_2] : memref<256x32xf32, #tpu.memory_space<vmem>>, vector<256x32xf32>
    %cst = arith.constant dense<0.000000e+00> : vector<8x32xf32>
    %7 = tpu.matmul %5, %6, %cst {dimension_numbers = #tpu.dot_dimension_numbers<[1], [0], [0], [1], [0, 0, 1, 1], [], []>} : vector<8x256xf32>, vector<256x32xf32>, vector<8x32xf32> -> vector<8x32xf32>
    %c0_3 = arith.constant 0 : index
    %c0_4 = arith.constant 0 : index
    %8 = vector.load %arg3[%c0_3, %c0_4] : memref<32x8xf32, #tpu.memory_space<vmem>>, vector<32x8xf32>
    %9 = tpu.iota {dimensions = array<i32: 0>} : vector<8x1xi32>
    %10 = arith.mulf %7, %7 : vector<8x32xf32>
    %cst_5 = arith.constant dense<0.000000e+00> : vector<8xf32>
    %11 = vector.multi_reduction <add>, %10, %cst_5 [1] : vector<8x32xf32> to vector<8xf32>
    %12 = vector.shape_cast %11 : vector<8xf32> to vector<8x1xf32>
    %cst_6 = arith.constant 3.200000e+01 : f32
    %13 = vector.broadcast %cst_6 : f32 to vector<8x1xf32>
    %14 = arith.divf %12, %13 : vector<8x1xf32>
    %cst_7 = arith.constant 9.99999974E-6 : f32
    %15 = vector.broadcast %cst_7 : f32 to vector<8x1xf32>
    %16 = arith.addf %14, %15 : vector<8x1xf32>
    %17 = math.rsqrt %16 : vector<8x1xf32>
    %18 = vector.broadcast %17 : vector<8x1xf32> to vector<8x32xf32>
    %19 = arith.mulf %7, %18 : vector<8x32xf32>
    %c0_8 = arith.constant 0 : index
    %c0_9 = arith.constant 0 : index
    %c0_10 = arith.constant 0 : index
    %20 = vector.load %arg2[%c0_8, %c0_9, %c0_10] : memref<2x32x128xf32, #tpu.memory_space<vmem>>, vector<1x32x128xf32>
    %21 = vector.shape_cast %20 : vector<1x32x128xf32> to vector<32x128xf32>
    %cst_11 = arith.constant dense<0.000000e+00> : vector<8x128xf32>
    %22 = tpu.matmul %19, %21, %cst_11 {dimension_numbers = #tpu.dot_dimension_numbers<[1], [0], [0], [1], [0, 0, 1, 1], [], []>} : vector<8x32xf32>, vector<32x128xf32>, vector<8x128xf32> -> vector<8x128xf32>
    %23 = vector.extract_strided_slice %22 {offsets = [0, 0], sizes = [8, 64], strides = [1, 1]} : vector<8x128xf32> to vector<8x64xf32>
    %24 = vector.extract_strided_slice %22 {offsets = [0, 64], sizes = [8, 64], strides = [1, 1]} : vector<8x128xf32> to vector<8x64xf32>
    %cst_12 = arith.constant dense<0.000000e+00> : vector<32x64xf32>
    %25 = tpu.matmul %8, %23, %cst_12 {dimension_numbers = #tpu.dot_dimension_numbers<[1], [0], [0], [1], [0, 0, 1, 1], [], []>} : vector<32x8xf32>, vector<8x64xf32>, vector<32x64xf32> -> vector<32x64xf32>
    %c0_13 = arith.constant 0 : index
    %c0_14 = arith.constant 0 : index
    %c0_15 = arith.constant 0 : index
    %26 = vector.load %arg4[%c0_13, %c0_14, %c0_15] : memref<2x4x64xf32, #tpu.memory_space<vmem>>, vector<1x4x64xf32>
    %27 = vector.shape_cast %26 : vector<1x4x64xf32> to vector<4x64xf32>
    %c0_16 = arith.constant 0 : index
    %c0_17 = arith.constant 0 : index
    %c0_18 = arith.constant 0 : index
    %28 = vector.load %arg5[%c0_16, %c0_17, %c0_18] : memref<2x1x64xf32, #tpu.memory_space<vmem>>, vector<1x1x64xf32>
    %29 = vector.shape_cast %28 : vector<1x1x64xf32> to vector<1x64xf32>
    %30 = vector.extract_strided_slice %25 {offsets = [0, 0], sizes = [8, 64], strides = [1, 1]} : vector<32x64xf32> to vector<8x64xf32>
    %31 = vector.extract_strided_slice %27 {offsets = [0, 0], sizes = [1, 64], strides = [1, 1]} : vector<4x64xf32> to vector<1x64xf32>
    %32 = vector.broadcast %31 : vector<1x64xf32> to vector<8x64xf32>
    %33 = arith.mulf %30, %32 : vector<8x64xf32>
    %34 = vector.broadcast %29 : vector<1x64xf32> to vector<8x64xf32>
    %35 = arith.addf %34, %33 : vector<8x64xf32>
    %36 = vector.extract_strided_slice %25 {offsets = [8, 0], sizes = [8, 64], strides = [1, 1]} : vector<32x64xf32> to vector<8x64xf32>
    %37 = vector.extract_strided_slice %27 {offsets = [1, 0], sizes = [1, 64], strides = [1, 1]} : vector<4x64xf32> to vector<1x64xf32>
    %38 = vector.broadcast %37 : vector<1x64xf32> to vector<8x64xf32>
    %39 = arith.mulf %36, %38 : vector<8x64xf32>
    %40 = arith.addf %35, %39 : vector<8x64xf32>
    %41 = vector.extract_strided_slice %25 {offsets = [16, 0], sizes = [8, 64], strides = [1, 1]} : vector<32x64xf32> to vector<8x64xf32>
    %42 = vector.extract_strided_slice %27 {offsets = [2, 0], sizes = [1, 64], strides = [1, 1]} : vector<4x64xf32> to vector<1x64xf32>
    %43 = vector.broadcast %42 : vector<1x64xf32> to vector<8x64xf32>
    %44 = arith.mulf %41, %43 : vector<8x64xf32>
    %45 = arith.addf %40, %44 : vector<8x64xf32>
    %46 = vector.extract_strided_slice %25 {offsets = [24, 0], sizes = [8, 64], strides = [1, 1]} : vector<32x64xf32> to vector<8x64xf32>
    %47 = vector.extract_strided_slice %27 {offsets = [3, 0], sizes = [1, 64], strides = [1, 1]} : vector<4x64xf32> to vector<1x64xf32>
    %48 = vector.broadcast %47 : vector<1x64xf32> to vector<8x64xf32>
    %49 = arith.mulf %46, %48 : vector<8x64xf32>
    %50 = arith.addf %45, %49 : vector<8x64xf32>
    %cst_19 = arith.constant 0.000000e+00 : f32
    %51 = vector.broadcast %cst_19 : f32 to vector<8x64xf32>
    %52 = arith.subf %51, %50 : vector<8x64xf32>
    %53 = math.exp %52 : vector<8x64xf32>
    %cst_20 = arith.constant 1.000000e+00 : f32
    %54 = vector.broadcast %cst_20 : f32 to vector<8x64xf32>
    %55 = arith.addf %54, %53 : vector<8x64xf32>
    %cst_21 = arith.constant 1.000000e+00 : f32
    %56 = vector.broadcast %cst_21 : f32 to vector<8x64xf32>
    %57 = arith.divf %56, %55 : vector<8x64xf32>
    %58 = arith.mulf %50, %57 : vector<8x64xf32>
    %c0_22 = arith.constant 0 : index
    %c0_23 = arith.constant 0 : index
    %c0_24 = arith.constant 0 : index
    %59 = vector.load %arg6[%c0_22, %c0_23, %c0_24] : memref<2x64x128xf32, #tpu.memory_space<vmem>>, vector<1x64x128xf32>
    %60 = vector.shape_cast %59 : vector<1x64x128xf32> to vector<64x128xf32>
    %cst_25 = arith.constant dense<0.000000e+00> : vector<8x128xf32>
    %61 = tpu.matmul %58, %60, %cst_25 {dimension_numbers = #tpu.dot_dimension_numbers<[1], [0], [0], [1], [0, 0, 1, 1], [], []>} : vector<8x64xf32>, vector<64x128xf32>, vector<8x128xf32> -> vector<8x128xf32>
    %62 = vector.extract_strided_slice %61 {offsets = [0, 64], sizes = [8, 64], strides = [1, 1]} : vector<8x128xf32> to vector<8x64xf32>
    %c0_26 = arith.constant 0 : index
    %c0_27 = arith.constant 0 : index
    %c0_28 = arith.constant 0 : index
    %63 = vector.load %arg7[%c0_26, %c0_27, %c0_28] : memref<2x1x64xf32, #tpu.memory_space<vmem>>, vector<1x1x64xf32>
    %64 = vector.shape_cast %63 : vector<1x1x64xf32> to vector<1x64xf32>
    %65 = vector.broadcast %64 : vector<1x64xf32> to vector<8x64xf32>
    %66 = arith.addf %62, %65 : vector<8x64xf32>
    %cst_29 = arith.constant 0.000000e+00 : f32
    %67 = vector.broadcast %cst_29 : f32 to vector<8x64xf32>
    %68 = arith.maximumf %66, %67 : vector<8x64xf32>
    %69 = math.absf %66 : vector<8x64xf32>
    %cst_30 = arith.constant 0.000000e+00 : f32
    %70 = vector.broadcast %cst_30 : f32 to vector<8x64xf32>
    %71 = arith.subf %70, %69 : vector<8x64xf32>
    %72 = math.exp %71 : vector<8x64xf32>
    %73 = math.log1p %72 : vector<8x64xf32>
    %74 = arith.addf %68, %73 : vector<8x64xf32>
    %75 = tpu.transpose %61, [1, 0] : vector<8x128xf32> -> vector<128x8xf32>
    %76 = vector.extract_strided_slice %75 {offsets = [0, 0], sizes = [16, 8], strides = [1, 1]} : vector<128x8xf32> to vector<16x8xf32>
    %77 = vector.extract_strided_slice %75 {offsets = [16, 0], sizes = [16, 8], strides = [1, 1]} : vector<128x8xf32> to vector<16x8xf32>
    %c0_31 = arith.constant 0 : index
    %c0_32 = arith.constant 0 : index
    %c0_33 = arith.constant 0 : index
    %78 = vector.load %arg8[%c0_31, %c0_32, %c0_33] : memref<2x16x64xf32, #tpu.memory_space<vmem>>, vector<1x16x64xf32>
    %79 = vector.shape_cast %78 : vector<1x16x64xf32> to vector<16x64xf32>
    %cst_34 = arith.constant 0.000000e+00 : f32
    %80 = vector.broadcast %cst_34 : f32 to vector<8x64xf32>
    %81 = arith.subf %80, %24 : vector<8x64xf32>
    %82 = math.exp %81 : vector<8x64xf32>
    %cst_35 = arith.constant 1.000000e+00 : f32
    %83 = vector.broadcast %cst_35 : f32 to vector<8x64xf32>
    %84 = arith.addf %83, %82 : vector<8x64xf32>
    %cst_36 = arith.constant 1.000000e+00 : f32
    %85 = vector.broadcast %cst_36 : f32 to vector<8x64xf32>
    %86 = arith.divf %85, %84 : vector<8x64xf32>
    %87 = arith.mulf %24, %86 : vector<8x64xf32>
    %88 = arith.mulf %74, %58 : vector<8x64xf32>
    %89 = vector.extract_strided_slice %74 {offsets = [0, 0], sizes = [1, 64], strides = [1, 1]} : vector<8x64xf32> to vector<1x64xf32>
    %90 = vector.broadcast %89 : vector<1x64xf32> to vector<16x64xf32>
    %91 = arith.mulf %90, %79 : vector<16x64xf32>
    %92 = math.exp %91 : vector<16x64xf32>
    %93 = vector.extract_strided_slice %88 {offsets = [0, 0], sizes = [1, 64], strides = [1, 1]} : vector<8x64xf32> to vector<1x64xf32>
    %94 = vector.extract_strided_slice %76 {offsets = [0, 0], sizes = [16, 1], strides = [1, 1]} : vector<16x8xf32> to vector<16x1xf32>
    %95 = vector.broadcast %93 : vector<1x64xf32> to vector<16x64xf32>
    %96 = vector.broadcast %94 : vector<16x1xf32> to vector<16x64xf32>
    %97 = arith.mulf %95, %96 : vector<16x64xf32>
    %98 = vector.extract_strided_slice %74 {offsets = [1, 0], sizes = [1, 64], strides = [1, 1]} : vector<8x64xf32> to vector<1x64xf32>
    %99 = vector.broadcast %98 : vector<1x64xf32> to vector<16x64xf32>
    %100 = arith.mulf %99, %79 : vector<16x64xf32>
    %101 = math.exp %100 : vector<16x64xf32>
    %102 = vector.extract_strided_slice %88 {offsets = [1, 0], sizes = [1, 64], strides = [1, 1]} : vector<8x64xf32> to vector<1x64xf32>
    %103 = vector.extract_strided_slice %76 {offsets = [0, 1], sizes = [16, 1], strides = [1, 1]} : vector<16x8xf32> to vector<16x1xf32>
    %104 = vector.broadcast %102 : vector<1x64xf32> to vector<16x64xf32>
    %105 = vector.broadcast %103 : vector<16x1xf32> to vector<16x64xf32>
    %106 = arith.mulf %104, %105 : vector<16x64xf32>
    %107 = vector.extract_strided_slice %74 {offsets = [2, 0], sizes = [1, 64], strides = [1, 1]} : vector<8x64xf32> to vector<1x64xf32>
    %108 = vector.broadcast %107 : vector<1x64xf32> to vector<16x64xf32>
    %109 = arith.mulf %108, %79 : vector<16x64xf32>
    %110 = math.exp %109 : vector<16x64xf32>
    %111 = vector.extract_strided_slice %88 {offsets = [2, 0], sizes = [1, 64], strides = [1, 1]} : vector<8x64xf32> to vector<1x64xf32>
    %112 = vector.extract_strided_slice %76 {offsets = [0, 2], sizes = [16, 1], strides = [1, 1]} : vector<16x8xf32> to vector<16x1xf32>
    %113 = vector.broadcast %111 : vector<1x64xf32> to vector<16x64xf32>
    %114 = vector.broadcast %112 : vector<16x1xf32> to vector<16x64xf32>
    %115 = arith.mulf %113, %114 : vector<16x64xf32>
    %116 = vector.extract_strided_slice %74 {offsets = [3, 0], sizes = [1, 64], strides = [1, 1]} : vector<8x64xf32> to vector<1x64xf32>
    %117 = vector.broadcast %116 : vector<1x64xf32> to vector<16x64xf32>
    %118 = arith.mulf %117, %79 : vector<16x64xf32>
    %119 = math.exp %118 : vector<16x64xf32>
    %120 = vector.extract_strided_slice %88 {offsets = [3, 0], sizes = [1, 64], strides = [1, 1]} : vector<8x64xf32> to vector<1x64xf32>
    %121 = vector.extract_strided_slice %76 {offsets = [0, 3], sizes = [16, 1], strides = [1, 1]} : vector<16x8xf32> to vector<16x1xf32>
    %122 = vector.broadcast %120 : vector<1x64xf32> to vector<16x64xf32>
    %123 = vector.broadcast %121 : vector<16x1xf32> to vector<16x64xf32>
    %124 = arith.mulf %122, %123 : vector<16x64xf32>
    %125 = vector.extract_strided_slice %74 {offsets = [4, 0], sizes = [1, 64], strides = [1, 1]} : vector<8x64xf32> to vector<1x64xf32>
    %126 = vector.broadcast %125 : vector<1x64xf32> to vector<16x64xf32>
    %127 = arith.mulf %126, %79 : vector<16x64xf32>
    %128 = math.exp %127 : vector<16x64xf32>
    %129 = vector.extract_strided_slice %88 {offsets = [4, 0], sizes = [1, 64], strides = [1, 1]} : vector<8x64xf32> to vector<1x64xf32>
    %130 = vector.extract_strided_slice %76 {offsets = [0, 4], sizes = [16, 1], strides = [1, 1]} : vector<16x8xf32> to vector<16x1xf32>
    %131 = vector.broadcast %129 : vector<1x64xf32> to vector<16x64xf32>
    %132 = vector.broadcast %130 : vector<16x1xf32> to vector<16x64xf32>
    %133 = arith.mulf %131, %132 : vector<16x64xf32>
    %134 = vector.extract_strided_slice %74 {offsets = [5, 0], sizes = [1, 64], strides = [1, 1]} : vector<8x64xf32> to vector<1x64xf32>
    %135 = vector.broadcast %134 : vector<1x64xf32> to vector<16x64xf32>
    %136 = arith.mulf %135, %79 : vector<16x64xf32>
    %137 = math.exp %136 : vector<16x64xf32>
    %138 = vector.extract_strided_slice %88 {offsets = [5, 0], sizes = [1, 64], strides = [1, 1]} : vector<8x64xf32> to vector<1x64xf32>
    %139 = vector.extract_strided_slice %76 {offsets = [0, 5], sizes = [16, 1], strides = [1, 1]} : vector<16x8xf32> to vector<16x1xf32>
    %140 = vector.broadcast %138 : vector<1x64xf32> to vector<16x64xf32>
    %141 = vector.broadcast %139 : vector<16x1xf32> to vector<16x64xf32>
    %142 = arith.mulf %140, %141 : vector<16x64xf32>
    %143 = vector.extract_strided_slice %74 {offsets = [6, 0], sizes = [1, 64], strides = [1, 1]} : vector<8x64xf32> to vector<1x64xf32>
    %144 = vector.broadcast %143 : vector<1x64xf32> to vector<16x64xf32>
    %145 = arith.mulf %144, %79 : vector<16x64xf32>
    %146 = math.exp %145 : vector<16x64xf32>
    %147 = vector.extract_strided_slice %88 {offsets = [6, 0], sizes = [1, 64], strides = [1, 1]} : vector<8x64xf32> to vector<1x64xf32>
    %148 = vector.extract_strided_slice %76 {offsets = [0, 6], sizes = [16, 1], strides = [1, 1]} : vector<16x8xf32> to vector<16x1xf32>
    %149 = vector.broadcast %147 : vector<1x64xf32> to vector<16x64xf32>
    %150 = vector.broadcast %148 : vector<16x1xf32> to vector<16x64xf32>
    %151 = arith.mulf %149, %150 : vector<16x64xf32>
    %152 = vector.extract_strided_slice %74 {offsets = [7, 0], sizes = [1, 64], strides = [1, 1]} : vector<8x64xf32> to vector<1x64xf32>
    %153 = vector.broadcast %152 : vector<1x64xf32> to vector<16x64xf32>
    %154 = arith.mulf %153, %79 : vector<16x64xf32>
    %155 = math.exp %154 : vector<16x64xf32>
    %156 = vector.extract_strided_slice %88 {offsets = [7, 0], sizes = [1, 64], strides = [1, 1]} : vector<8x64xf32> to vector<1x64xf32>
    %157 = vector.extract_strided_slice %76 {offsets = [0, 7], sizes = [16, 1], strides = [1, 1]} : vector<16x8xf32> to vector<16x1xf32>
    %158 = vector.broadcast %156 : vector<1x64xf32> to vector<16x64xf32>
    %159 = vector.broadcast %157 : vector<16x1xf32> to vector<16x64xf32>
    %160 = arith.mulf %158, %159 : vector<16x64xf32>
    %cst_37 = arith.constant 0.000000e+00 : f32
    %161 = vector.broadcast %cst_37 : f32 to vector<16x64xf32>
    %162 = arith.mulf %92, %161 : vector<16x64xf32>
    %163 = arith.addf %162, %97 : vector<16x64xf32>
    %164 = arith.mulf %101, %163 : vector<16x64xf32>
    %165 = arith.addf %164, %106 : vector<16x64xf32>
    %166 = arith.mulf %110, %165 : vector<16x64xf32>
    %167 = arith.addf %166, %115 : vector<16x64xf32>
    %168 = arith.mulf %119, %167 : vector<16x64xf32>
    %169 = arith.addf %168, %124 : vector<16x64xf32>
    %170 = arith.mulf %128, %169 : vector<16x64xf32>
    %171 = arith.addf %170, %133 : vector<16x64xf32>
    %172 = arith.mulf %137, %171 : vector<16x64xf32>
    %173 = arith.addf %172, %142 : vector<16x64xf32>
    %174 = arith.mulf %146, %173 : vector<16x64xf32>
    %175 = arith.addf %174, %151 : vector<16x64xf32>
    %176 = arith.mulf %155, %175 : vector<16x64xf32>
    %177 = arith.addf %176, %160 : vector<16x64xf32>
    %cst_38 = arith.constant 0.000000e+00 : f32
    %178 = vector.broadcast %cst_38 : f32 to vector<8x64xf32>
    %179 = vector.extract_strided_slice %77 {offsets = [0, 0], sizes = [16, 1], strides = [1, 1]} : vector<16x8xf32> to vector<16x1xf32>
    %180 = vector.broadcast %179 : vector<16x1xf32> to vector<16x64xf32>
    %181 = arith.mulf %163, %180 : vector<16x64xf32>
    %cst_39 = arith.constant dense<0.000000e+00> : vector<64xf32>
    %182 = vector.multi_reduction <add>, %181, %cst_39 [0] : vector<16x64xf32> to vector<64xf32>
    %183 = vector.shape_cast %182 : vector<64xf32> to vector<1x64xf32>
    %c0_i32 = arith.constant 0 : i32
    %184 = vector.broadcast %c0_i32 : i32 to vector<8x1xi32>
    %185 = arith.cmpi eq, %9, %184 : vector<8x1xi32>
    %186 = vector.shape_cast %185 : vector<8x1xi1> to vector<8x1xi1>
    %187 = vector.broadcast %186 : vector<8x1xi1> to vector<8x64xi1>
    %188 = vector.shape_cast %183 : vector<1x64xf32> to vector<1x64xf32>
    %189 = vector.broadcast %188 : vector<1x64xf32> to vector<8x64xf32>
    %190 = arith.select %187, %189, %178 : vector<8x64xi1>, vector<8x64xf32>
    %191 = vector.extract_strided_slice %77 {offsets = [0, 1], sizes = [16, 1], strides = [1, 1]} : vector<16x8xf32> to vector<16x1xf32>
    %192 = vector.broadcast %191 : vector<16x1xf32> to vector<16x64xf32>
    %193 = arith.mulf %165, %192 : vector<16x64xf32>
    %cst_40 = arith.constant dense<0.000000e+00> : vector<64xf32>
    %194 = vector.multi_reduction <add>, %193, %cst_40 [0] : vector<16x64xf32> to vector<64xf32>
    %195 = vector.shape_cast %194 : vector<64xf32> to vector<1x64xf32>
    %c1_i32 = arith.constant 1 : i32
    %196 = vector.broadcast %c1_i32 : i32 to vector<8x1xi32>
    %197 = arith.cmpi eq, %9, %196 : vector<8x1xi32>
    %198 = vector.shape_cast %197 : vector<8x1xi1> to vector<8x1xi1>
    %199 = vector.broadcast %198 : vector<8x1xi1> to vector<8x64xi1>
    %200 = vector.shape_cast %195 : vector<1x64xf32> to vector<1x64xf32>
    %201 = vector.broadcast %200 : vector<1x64xf32> to vector<8x64xf32>
    %202 = arith.select %199, %201, %190 : vector<8x64xi1>, vector<8x64xf32>
    %203 = vector.extract_strided_slice %77 {offsets = [0, 2], sizes = [16, 1], strides = [1, 1]} : vector<16x8xf32> to vector<16x1xf32>
    %204 = vector.broadcast %203 : vector<16x1xf32> to vector<16x64xf32>
    %205 = arith.mulf %167, %204 : vector<16x64xf32>
    %cst_41 = arith.constant dense<0.000000e+00> : vector<64xf32>
    %206 = vector.multi_reduction <add>, %205, %cst_41 [0] : vector<16x64xf32> to vector<64xf32>
    %207 = vector.shape_cast %206 : vector<64xf32> to vector<1x64xf32>
    %c2_i32 = arith.constant 2 : i32
    %208 = vector.broadcast %c2_i32 : i32 to vector<8x1xi32>
    %209 = arith.cmpi eq, %9, %208 : vector<8x1xi32>
    %210 = vector.shape_cast %209 : vector<8x1xi1> to vector<8x1xi1>
    %211 = vector.broadcast %210 : vector<8x1xi1> to vector<8x64xi1>
    %212 = vector.shape_cast %207 : vector<1x64xf32> to vector<1x64xf32>
    %213 = vector.broadcast %212 : vector<1x64xf32> to vector<8x64xf32>
    %214 = arith.select %211, %213, %202 : vector<8x64xi1>, vector<8x64xf32>
    %215 = vector.extract_strided_slice %77 {offsets = [0, 3], sizes = [16, 1], strides = [1, 1]} : vector<16x8xf32> to vector<16x1xf32>
    %216 = vector.broadcast %215 : vector<16x1xf32> to vector<16x64xf32>
    %217 = arith.mulf %169, %216 : vector<16x64xf32>
    %cst_42 = arith.constant dense<0.000000e+00> : vector<64xf32>
    %218 = vector.multi_reduction <add>, %217, %cst_42 [0] : vector<16x64xf32> to vector<64xf32>
    %219 = vector.shape_cast %218 : vector<64xf32> to vector<1x64xf32>
    %c3_i32 = arith.constant 3 : i32
    %220 = vector.broadcast %c3_i32 : i32 to vector<8x1xi32>
    %221 = arith.cmpi eq, %9, %220 : vector<8x1xi32>
    %222 = vector.shape_cast %221 : vector<8x1xi1> to vector<8x1xi1>
    %223 = vector.broadcast %222 : vector<8x1xi1> to vector<8x64xi1>
    %224 = vector.shape_cast %219 : vector<1x64xf32> to vector<1x64xf32>
    %225 = vector.broadcast %224 : vector<1x64xf32> to vector<8x64xf32>
    %226 = arith.select %223, %225, %214 : vector<8x64xi1>, vector<8x64xf32>
    %227 = vector.extract_strided_slice %77 {offsets = [0, 4], sizes = [16, 1], strides = [1, 1]} : vector<16x8xf32> to vector<16x1xf32>
    %228 = vector.broadcast %227 : vector<16x1xf32> to vector<16x64xf32>
    %229 = arith.mulf %171, %228 : vector<16x64xf32>
    %cst_43 = arith.constant dense<0.000000e+00> : vector<64xf32>
    %230 = vector.multi_reduction <add>, %229, %cst_43 [0] : vector<16x64xf32> to vector<64xf32>
    %231 = vector.shape_cast %230 : vector<64xf32> to vector<1x64xf32>
    %c4_i32 = arith.constant 4 : i32
    %232 = vector.broadcast %c4_i32 : i32 to vector<8x1xi32>
    %233 = arith.cmpi eq, %9, %232 : vector<8x1xi32>
    %234 = vector.shape_cast %233 : vector<8x1xi1> to vector<8x1xi1>
    %235 = vector.broadcast %234 : vector<8x1xi1> to vector<8x64xi1>
    %236 = vector.shape_cast %231 : vector<1x64xf32> to vector<1x64xf32>
    %237 = vector.broadcast %236 : vector<1x64xf32> to vector<8x64xf32>
    %238 = arith.select %235, %237, %226 : vector<8x64xi1>, vector<8x64xf32>
    %239 = vector.extract_strided_slice %77 {offsets = [0, 5], sizes = [16, 1], strides = [1, 1]} : vector<16x8xf32> to vector<16x1xf32>
    %240 = vector.broadcast %239 : vector<16x1xf32> to vector<16x64xf32>
    %241 = arith.mulf %173, %240 : vector<16x64xf32>
    %cst_44 = arith.constant dense<0.000000e+00> : vector<64xf32>
    %242 = vector.multi_reduction <add>, %241, %cst_44 [0] : vector<16x64xf32> to vector<64xf32>
    %243 = vector.shape_cast %242 : vector<64xf32> to vector<1x64xf32>
    %c5_i32 = arith.constant 5 : i32
    %244 = vector.broadcast %c5_i32 : i32 to vector<8x1xi32>
    %245 = arith.cmpi eq, %9, %244 : vector<8x1xi32>
    %246 = vector.shape_cast %245 : vector<8x1xi1> to vector<8x1xi1>
    %247 = vector.broadcast %246 : vector<8x1xi1> to vector<8x64xi1>
    %248 = vector.shape_cast %243 : vector<1x64xf32> to vector<1x64xf32>
    %249 = vector.broadcast %248 : vector<1x64xf32> to vector<8x64xf32>
    %250 = arith.select %247, %249, %238 : vector<8x64xi1>, vector<8x64xf32>
    %251 = vector.extract_strided_slice %77 {offsets = [0, 6], sizes = [16, 1], strides = [1, 1]} : vector<16x8xf32> to vector<16x1xf32>
    %252 = vector.broadcast %251 : vector<16x1xf32> to vector<16x64xf32>
    %253 = arith.mulf %175, %252 : vector<16x64xf32>
    %cst_45 = arith.constant dense<0.000000e+00> : vector<64xf32>
    %254 = vector.multi_reduction <add>, %253, %cst_45 [0] : vector<16x64xf32> to vector<64xf32>
    %255 = vector.shape_cast %254 : vector<64xf32> to vector<1x64xf32>
    %c6_i32 = arith.constant 6 : i32
    %256 = vector.broadcast %c6_i32 : i32 to vector<8x1xi32>
    %257 = arith.cmpi eq, %9, %256 : vector<8x1xi32>
    %258 = vector.shape_cast %257 : vector<8x1xi1> to vector<8x1xi1>
    %259 = vector.broadcast %258 : vector<8x1xi1> to vector<8x64xi1>
    %260 = vector.shape_cast %255 : vector<1x64xf32> to vector<1x64xf32>
    %261 = vector.broadcast %260 : vector<1x64xf32> to vector<8x64xf32>
    %262 = arith.select %259, %261, %250 : vector<8x64xi1>, vector<8x64xf32>
    %263 = vector.extract_strided_slice %77 {offsets = [0, 7], sizes = [16, 1], strides = [1, 1]} : vector<16x8xf32> to vector<16x1xf32>
    %264 = vector.broadcast %263 : vector<16x1xf32> to vector<16x64xf32>
    %265 = arith.mulf %177, %264 : vector<16x64xf32>
    %cst_46 = arith.constant dense<0.000000e+00> : vector<64xf32>
    %266 = vector.multi_reduction <add>, %265, %cst_46 [0] : vector<16x64xf32> to vector<64xf32>
    %267 = vector.shape_cast %266 : vector<64xf32> to vector<1x64xf32>
    %c7_i32 = arith.constant 7 : i32
    %268 = vector.broadcast %c7_i32 : i32 to vector<8x1xi32>
    %269 = arith.cmpi eq, %9, %268 : vector<8x1xi32>
    %270 = vector.shape_cast %269 : vector<8x1xi1> to vector<8x1xi1>
    %271 = vector.broadcast %270 : vector<8x1xi1> to vector<8x64xi1>
    %272 = vector.shape_cast %267 : vector<1x64xf32> to vector<1x64xf32>
    %273 = vector.broadcast %272 : vector<1x64xf32> to vector<8x64xf32>
    %274 = arith.select %271, %273, %262 : vector<8x64xi1>, vector<8x64xf32>
    %c0_47 = arith.constant 0 : index
    %c0_48 = arith.constant 0 : index
    %c0_49 = arith.constant 0 : index
    %275 = vector.load %arg9[%c0_47, %c0_48, %c0_49] : memref<2x1x64xf32, #tpu.memory_space<vmem>>, vector<1x1x64xf32>
    %276 = vector.shape_cast %275 : vector<1x1x64xf32> to vector<1x64xf32>
    %277 = vector.broadcast %276 : vector<1x64xf32> to vector<8x64xf32>
    %278 = arith.mulf %277, %58 : vector<8x64xf32>
    %279 = arith.addf %274, %278 : vector<8x64xf32>
    %280 = arith.mulf %279, %87 : vector<8x64xf32>
    %c0_50 = arith.constant 0 : index
    %c0_51 = arith.constant 0 : index
    %c0_52 = arith.constant 0 : index
    %281 = vector.load %arg10[%c0_50, %c0_51, %c0_52] : memref<2x64x32xf32, #tpu.memory_space<vmem>>, vector<1x64x32xf32>
    %282 = vector.shape_cast %281 : vector<1x64x32xf32> to vector<64x32xf32>
    %cst_53 = arith.constant dense<0.000000e+00> : vector<8x32xf32>
    %283 = tpu.matmul %280, %282, %cst_53 {dimension_numbers = #tpu.dot_dimension_numbers<[1], [0], [0], [1], [0, 0, 1, 1], [], []>} : vector<8x64xf32>, vector<64x32xf32>, vector<8x32xf32> -> vector<8x32xf32>
    %284 = arith.addf %283, %7 : vector<8x32xf32>
    %285 = arith.mulf %284, %284 : vector<8x32xf32>
    %cst_54 = arith.constant dense<0.000000e+00> : vector<8xf32>
    %286 = vector.multi_reduction <add>, %285, %cst_54 [1] : vector<8x32xf32> to vector<8xf32>
    %287 = vector.shape_cast %286 : vector<8xf32> to vector<8x1xf32>
    %cst_55 = arith.constant 3.200000e+01 : f32
    %288 = vector.broadcast %cst_55 : f32 to vector<8x1xf32>
    %289 = arith.divf %287, %288 : vector<8x1xf32>
    %cst_56 = arith.constant 9.99999974E-6 : f32
    %290 = vector.broadcast %cst_56 : f32 to vector<8x1xf32>
    %291 = arith.addf %289, %290 : vector<8x1xf32>
    %292 = math.rsqrt %291 : vector<8x1xf32>
    %293 = vector.broadcast %292 : vector<8x1xf32> to vector<8x32xf32>
    %294 = arith.mulf %284, %293 : vector<8x32xf32>
    %c1 = arith.constant 1 : index
    %c0_57 = arith.constant 0 : index
    %c0_58 = arith.constant 0 : index
    %295 = vector.load %arg2[%c1, %c0_57, %c0_58] : memref<2x32x128xf32, #tpu.memory_space<vmem>>, vector<1x32x128xf32>
    %296 = vector.shape_cast %295 : vector<1x32x128xf32> to vector<32x128xf32>
    %cst_59 = arith.constant dense<0.000000e+00> : vector<8x128xf32>
    %297 = tpu.matmul %294, %296, %cst_59 {dimension_numbers = #tpu.dot_dimension_numbers<[1], [0], [0], [1], [0, 0, 1, 1], [], []>} : vector<8x32xf32>, vector<32x128xf32>, vector<8x128xf32> -> vector<8x128xf32>
    %298 = vector.extract_strided_slice %297 {offsets = [0, 0], sizes = [8, 64], strides = [1, 1]} : vector<8x128xf32> to vector<8x64xf32>
    %299 = vector.extract_strided_slice %297 {offsets = [0, 64], sizes = [8, 64], strides = [1, 1]} : vector<8x128xf32> to vector<8x64xf32>
    %cst_60 = arith.constant dense<0.000000e+00> : vector<32x64xf32>
    %300 = tpu.matmul %8, %298, %cst_60 {dimension_numbers = #tpu.dot_dimension_numbers<[1], [0], [0], [1], [0, 0, 1, 1], [], []>} : vector<32x8xf32>, vector<8x64xf32>, vector<32x64xf32> -> vector<32x64xf32>
    %c1_61 = arith.constant 1 : index
    %c0_62 = arith.constant 0 : index
    %c0_63 = arith.constant 0 : index
    %301 = vector.load %arg4[%c1_61, %c0_62, %c0_63] : memref<2x4x64xf32, #tpu.memory_space<vmem>>, vector<1x4x64xf32>
    %302 = vector.shape_cast %301 : vector<1x4x64xf32> to vector<4x64xf32>
    %c1_64 = arith.constant 1 : index
    %c0_65 = arith.constant 0 : index
    %c0_66 = arith.constant 0 : index
    %303 = vector.load %arg5[%c1_64, %c0_65, %c0_66] : memref<2x1x64xf32, #tpu.memory_space<vmem>>, vector<1x1x64xf32>
    %304 = vector.shape_cast %303 : vector<1x1x64xf32> to vector<1x64xf32>
    %305 = vector.extract_strided_slice %300 {offsets = [0, 0], sizes = [8, 64], strides = [1, 1]} : vector<32x64xf32> to vector<8x64xf32>
    %306 = vector.extract_strided_slice %302 {offsets = [0, 0], sizes = [1, 64], strides = [1, 1]} : vector<4x64xf32> to vector<1x64xf32>
    %307 = vector.broadcast %306 : vector<1x64xf32> to vector<8x64xf32>
    %308 = arith.mulf %305, %307 : vector<8x64xf32>
    %309 = vector.broadcast %304 : vector<1x64xf32> to vector<8x64xf32>
    %310 = arith.addf %309, %308 : vector<8x64xf32>
    %311 = vector.extract_strided_slice %300 {offsets = [8, 0], sizes = [8, 64], strides = [1, 1]} : vector<32x64xf32> to vector<8x64xf32>
    %312 = vector.extract_strided_slice %302 {offsets = [1, 0], sizes = [1, 64], strides = [1, 1]} : vector<4x64xf32> to vector<1x64xf32>
    %313 = vector.broadcast %312 : vector<1x64xf32> to vector<8x64xf32>
    %314 = arith.mulf %311, %313 : vector<8x64xf32>
    %315 = arith.addf %310, %314 : vector<8x64xf32>
    %316 = vector.extract_strided_slice %300 {offsets = [16, 0], sizes = [8, 64], strides = [1, 1]} : vector<32x64xf32> to vector<8x64xf32>
    %317 = vector.extract_strided_slice %302 {offsets = [2, 0], sizes = [1, 64], strides = [1, 1]} : vector<4x64xf32> to vector<1x64xf32>
    %318 = vector.broadcast %317 : vector<1x64xf32> to vector<8x64xf32>
    %319 = arith.mulf %316, %318 : vector<8x64xf32>
    %320 = arith.addf %315, %319 : vector<8x64xf32>
    %321 = vector.extract_strided_slice %300 {offsets = [24, 0], sizes = [8, 64], strides = [1, 1]} : vector<32x64xf32> to vector<8x64xf32>
    %322 = vector.extract_strided_slice %302 {offsets = [3, 0], sizes = [1, 64], strides = [1, 1]} : vector<4x64xf32> to vector<1x64xf32>
    %323 = vector.broadcast %322 : vector<1x64xf32> to vector<8x64xf32>
    %324 = arith.mulf %321, %323 : vector<8x64xf32>
    %325 = arith.addf %320, %324 : vector<8x64xf32>
    %cst_67 = arith.constant 0.000000e+00 : f32
    %326 = vector.broadcast %cst_67 : f32 to vector<8x64xf32>
    %327 = arith.subf %326, %325 : vector<8x64xf32>
    %328 = math.exp %327 : vector<8x64xf32>
    %cst_68 = arith.constant 1.000000e+00 : f32
    %329 = vector.broadcast %cst_68 : f32 to vector<8x64xf32>
    %330 = arith.addf %329, %328 : vector<8x64xf32>
    %cst_69 = arith.constant 1.000000e+00 : f32
    %331 = vector.broadcast %cst_69 : f32 to vector<8x64xf32>
    %332 = arith.divf %331, %330 : vector<8x64xf32>
    %333 = arith.mulf %325, %332 : vector<8x64xf32>
    %c1_70 = arith.constant 1 : index
    %c0_71 = arith.constant 0 : index
    %c0_72 = arith.constant 0 : index
    %334 = vector.load %arg6[%c1_70, %c0_71, %c0_72] : memref<2x64x128xf32, #tpu.memory_space<vmem>>, vector<1x64x128xf32>
    %335 = vector.shape_cast %334 : vector<1x64x128xf32> to vector<64x128xf32>
    %cst_73 = arith.constant dense<0.000000e+00> : vector<8x128xf32>
    %336 = tpu.matmul %333, %335, %cst_73 {dimension_numbers = #tpu.dot_dimension_numbers<[1], [0], [0], [1], [0, 0, 1, 1], [], []>} : vector<8x64xf32>, vector<64x128xf32>, vector<8x128xf32> -> vector<8x128xf32>
    %337 = vector.extract_strided_slice %336 {offsets = [0, 64], sizes = [8, 64], strides = [1, 1]} : vector<8x128xf32> to vector<8x64xf32>
    %c1_74 = arith.constant 1 : index
    %c0_75 = arith.constant 0 : index
    %c0_76 = arith.constant 0 : index
    %338 = vector.load %arg7[%c1_74, %c0_75, %c0_76] : memref<2x1x64xf32, #tpu.memory_space<vmem>>, vector<1x1x64xf32>
    %339 = vector.shape_cast %338 : vector<1x1x64xf32> to vector<1x64xf32>
    %340 = vector.broadcast %339 : vector<1x64xf32> to vector<8x64xf32>
    %341 = arith.addf %337, %340 : vector<8x64xf32>
    %cst_77 = arith.constant 0.000000e+00 : f32
    %342 = vector.broadcast %cst_77 : f32 to vector<8x64xf32>
    %343 = arith.maximumf %341, %342 : vector<8x64xf32>
    %344 = math.absf %341 : vector<8x64xf32>
    %cst_78 = arith.constant 0.000000e+00 : f32
    %345 = vector.broadcast %cst_78 : f32 to vector<8x64xf32>
    %346 = arith.subf %345, %344 : vector<8x64xf32>
    %347 = math.exp %346 : vector<8x64xf32>
    %348 = math.log1p %347 : vector<8x64xf32>
    %349 = arith.addf %343, %348 : vector<8x64xf32>
    %350 = tpu.transpose %336, [1, 0] : vector<8x128xf32> -> vector<128x8xf32>
    %351 = vector.extract_strided_slice %350 {offsets = [0, 0], sizes = [16, 8], strides = [1, 1]} : vector<128x8xf32> to vector<16x8xf32>
    %352 = vector.extract_strided_slice %350 {offsets = [16, 0], sizes = [16, 8], strides = [1, 1]} : vector<128x8xf32> to vector<16x8xf32>
    %c1_79 = arith.constant 1 : index
    %c0_80 = arith.constant 0 : index
    %c0_81 = arith.constant 0 : index
    %353 = vector.load %arg8[%c1_79, %c0_80, %c0_81] : memref<2x16x64xf32, #tpu.memory_space<vmem>>, vector<1x16x64xf32>
    %354 = vector.shape_cast %353 : vector<1x16x64xf32> to vector<16x64xf32>
    %cst_82 = arith.constant 0.000000e+00 : f32
    %355 = vector.broadcast %cst_82 : f32 to vector<8x64xf32>
    %356 = arith.subf %355, %299 : vector<8x64xf32>
    %357 = math.exp %356 : vector<8x64xf32>
    %cst_83 = arith.constant 1.000000e+00 : f32
    %358 = vector.broadcast %cst_83 : f32 to vector<8x64xf32>
    %359 = arith.addf %358, %357 : vector<8x64xf32>
    %cst_84 = arith.constant 1.000000e+00 : f32
    %360 = vector.broadcast %cst_84 : f32 to vector<8x64xf32>
    %361 = arith.divf %360, %359 : vector<8x64xf32>
    %362 = arith.mulf %299, %361 : vector<8x64xf32>
    %363 = arith.mulf %349, %333 : vector<8x64xf32>
    %364 = vector.extract_strided_slice %349 {offsets = [0, 0], sizes = [1, 64], strides = [1, 1]} : vector<8x64xf32> to vector<1x64xf32>
    %365 = vector.broadcast %364 : vector<1x64xf32> to vector<16x64xf32>
    %366 = arith.mulf %365, %354 : vector<16x64xf32>
    %367 = math.exp %366 : vector<16x64xf32>
    %368 = vector.extract_strided_slice %363 {offsets = [0, 0], sizes = [1, 64], strides = [1, 1]} : vector<8x64xf32> to vector<1x64xf32>
    %369 = vector.extract_strided_slice %351 {offsets = [0, 0], sizes = [16, 1], strides = [1, 1]} : vector<16x8xf32> to vector<16x1xf32>
    %370 = vector.broadcast %368 : vector<1x64xf32> to vector<16x64xf32>
    %371 = vector.broadcast %369 : vector<16x1xf32> to vector<16x64xf32>
    %372 = arith.mulf %370, %371 : vector<16x64xf32>
    %373 = vector.extract_strided_slice %349 {offsets = [1, 0], sizes = [1, 64], strides = [1, 1]} : vector<8x64xf32> to vector<1x64xf32>
    %374 = vector.broadcast %373 : vector<1x64xf32> to vector<16x64xf32>
    %375 = arith.mulf %374, %354 : vector<16x64xf32>
    %376 = math.exp %375 : vector<16x64xf32>
    %377 = vector.extract_strided_slice %363 {offsets = [1, 0], sizes = [1, 64], strides = [1, 1]} : vector<8x64xf32> to vector<1x64xf32>
    %378 = vector.extract_strided_slice %351 {offsets = [0, 1], sizes = [16, 1], strides = [1, 1]} : vector<16x8xf32> to vector<16x1xf32>
    %379 = vector.broadcast %377 : vector<1x64xf32> to vector<16x64xf32>
    %380 = vector.broadcast %378 : vector<16x1xf32> to vector<16x64xf32>
    %381 = arith.mulf %379, %380 : vector<16x64xf32>
    %382 = vector.extract_strided_slice %349 {offsets = [2, 0], sizes = [1, 64], strides = [1, 1]} : vector<8x64xf32> to vector<1x64xf32>
    %383 = vector.broadcast %382 : vector<1x64xf32> to vector<16x64xf32>
    %384 = arith.mulf %383, %354 : vector<16x64xf32>
    %385 = math.exp %384 : vector<16x64xf32>
    %386 = vector.extract_strided_slice %363 {offsets = [2, 0], sizes = [1, 64], strides = [1, 1]} : vector<8x64xf32> to vector<1x64xf32>
    %387 = vector.extract_strided_slice %351 {offsets = [0, 2], sizes = [16, 1], strides = [1, 1]} : vector<16x8xf32> to vector<16x1xf32>
    %388 = vector.broadcast %386 : vector<1x64xf32> to vector<16x64xf32>
    %389 = vector.broadcast %387 : vector<16x1xf32> to vector<16x64xf32>
    %390 = arith.mulf %388, %389 : vector<16x64xf32>
    %391 = vector.extract_strided_slice %349 {offsets = [3, 0], sizes = [1, 64], strides = [1, 1]} : vector<8x64xf32> to vector<1x64xf32>
    %392 = vector.broadcast %391 : vector<1x64xf32> to vector<16x64xf32>
    %393 = arith.mulf %392, %354 : vector<16x64xf32>
    %394 = math.exp %393 : vector<16x64xf32>
    %395 = vector.extract_strided_slice %363 {offsets = [3, 0], sizes = [1, 64], strides = [1, 1]} : vector<8x64xf32> to vector<1x64xf32>
    %396 = vector.extract_strided_slice %351 {offsets = [0, 3], sizes = [16, 1], strides = [1, 1]} : vector<16x8xf32> to vector<16x1xf32>
    %397 = vector.broadcast %395 : vector<1x64xf32> to vector<16x64xf32>
    %398 = vector.broadcast %396 : vector<16x1xf32> to vector<16x64xf32>
    %399 = arith.mulf %397, %398 : vector<16x64xf32>
    %400 = vector.extract_strided_slice %349 {offsets = [4, 0], sizes = [1, 64], strides = [1, 1]} : vector<8x64xf32> to vector<1x64xf32>
    %401 = vector.broadcast %400 : vector<1x64xf32> to vector<16x64xf32>
    %402 = arith.mulf %401, %354 : vector<16x64xf32>
    %403 = math.exp %402 : vector<16x64xf32>
    %404 = vector.extract_strided_slice %363 {offsets = [4, 0], sizes = [1, 64], strides = [1, 1]} : vector<8x64xf32> to vector<1x64xf32>
    %405 = vector.extract_strided_slice %351 {offsets = [0, 4], sizes = [16, 1], strides = [1, 1]} : vector<16x8xf32> to vector<16x1xf32>
    %406 = vector.broadcast %404 : vector<1x64xf32> to vector<16x64xf32>
    %407 = vector.broadcast %405 : vector<16x1xf32> to vector<16x64xf32>
    %408 = arith.mulf %406, %407 : vector<16x64xf32>
    %409 = vector.extract_strided_slice %349 {offsets = [5, 0], sizes = [1, 64], strides = [1, 1]} : vector<8x64xf32> to vector<1x64xf32>
    %410 = vector.broadcast %409 : vector<1x64xf32> to vector<16x64xf32>
    %411 = arith.mulf %410, %354 : vector<16x64xf32>
    %412 = math.exp %411 : vector<16x64xf32>
    %413 = vector.extract_strided_slice %363 {offsets = [5, 0], sizes = [1, 64], strides = [1, 1]} : vector<8x64xf32> to vector<1x64xf32>
    %414 = vector.extract_strided_slice %351 {offsets = [0, 5], sizes = [16, 1], strides = [1, 1]} : vector<16x8xf32> to vector<16x1xf32>
    %415 = vector.broadcast %413 : vector<1x64xf32> to vector<16x64xf32>
    %416 = vector.broadcast %414 : vector<16x1xf32> to vector<16x64xf32>
    %417 = arith.mulf %415, %416 : vector<16x64xf32>
    %418 = vector.extract_strided_slice %349 {offsets = [6, 0], sizes = [1, 64], strides = [1, 1]} : vector<8x64xf32> to vector<1x64xf32>
    %419 = vector.broadcast %418 : vector<1x64xf32> to vector<16x64xf32>
    %420 = arith.mulf %419, %354 : vector<16x64xf32>
    %421 = math.exp %420 : vector<16x64xf32>
    %422 = vector.extract_strided_slice %363 {offsets = [6, 0], sizes = [1, 64], strides = [1, 1]} : vector<8x64xf32> to vector<1x64xf32>
    %423 = vector.extract_strided_slice %351 {offsets = [0, 6], sizes = [16, 1], strides = [1, 1]} : vector<16x8xf32> to vector<16x1xf32>
    %424 = vector.broadcast %422 : vector<1x64xf32> to vector<16x64xf32>
    %425 = vector.broadcast %423 : vector<16x1xf32> to vector<16x64xf32>
    %426 = arith.mulf %424, %425 : vector<16x64xf32>
    %427 = vector.extract_strided_slice %349 {offsets = [7, 0], sizes = [1, 64], strides = [1, 1]} : vector<8x64xf32> to vector<1x64xf32>
    %428 = vector.broadcast %427 : vector<1x64xf32> to vector<16x64xf32>
    %429 = arith.mulf %428, %354 : vector<16x64xf32>
    %430 = math.exp %429 : vector<16x64xf32>
    %431 = vector.extract_strided_slice %363 {offsets = [7, 0], sizes = [1, 64], strides = [1, 1]} : vector<8x64xf32> to vector<1x64xf32>
    %432 = vector.extract_strided_slice %351 {offsets = [0, 7], sizes = [16, 1], strides = [1, 1]} : vector<16x8xf32> to vector<16x1xf32>
    %433 = vector.broadcast %431 : vector<1x64xf32> to vector<16x64xf32>
    %434 = vector.broadcast %432 : vector<16x1xf32> to vector<16x64xf32>
    %435 = arith.mulf %433, %434 : vector<16x64xf32>
    %cst_85 = arith.constant 0.000000e+00 : f32
    %436 = vector.broadcast %cst_85 : f32 to vector<16x64xf32>
    %437 = arith.mulf %367, %436 : vector<16x64xf32>
    %438 = arith.addf %437, %372 : vector<16x64xf32>
    %439 = arith.mulf %376, %438 : vector<16x64xf32>
    %440 = arith.addf %439, %381 : vector<16x64xf32>
    %441 = arith.mulf %385, %440 : vector<16x64xf32>
    %442 = arith.addf %441, %390 : vector<16x64xf32>
    %443 = arith.mulf %394, %442 : vector<16x64xf32>
    %444 = arith.addf %443, %399 : vector<16x64xf32>
    %445 = arith.mulf %403, %444 : vector<16x64xf32>
    %446 = arith.addf %445, %408 : vector<16x64xf32>
    %447 = arith.mulf %412, %446 : vector<16x64xf32>
    %448 = arith.addf %447, %417 : vector<16x64xf32>
    %449 = arith.mulf %421, %448 : vector<16x64xf32>
    %450 = arith.addf %449, %426 : vector<16x64xf32>
    %451 = arith.mulf %430, %450 : vector<16x64xf32>
    %452 = arith.addf %451, %435 : vector<16x64xf32>
    %cst_86 = arith.constant 0.000000e+00 : f32
    %453 = vector.broadcast %cst_86 : f32 to vector<8x64xf32>
    %454 = vector.extract_strided_slice %352 {offsets = [0, 0], sizes = [16, 1], strides = [1, 1]} : vector<16x8xf32> to vector<16x1xf32>
    %455 = vector.broadcast %454 : vector<16x1xf32> to vector<16x64xf32>
    %456 = arith.mulf %438, %455 : vector<16x64xf32>
    %cst_87 = arith.constant dense<0.000000e+00> : vector<64xf32>
    %457 = vector.multi_reduction <add>, %456, %cst_87 [0] : vector<16x64xf32> to vector<64xf32>
    %458 = vector.shape_cast %457 : vector<64xf32> to vector<1x64xf32>
    %c0_i32_88 = arith.constant 0 : i32
    %459 = vector.broadcast %c0_i32_88 : i32 to vector<8x1xi32>
    %460 = arith.cmpi eq, %9, %459 : vector<8x1xi32>
    %461 = vector.shape_cast %460 : vector<8x1xi1> to vector<8x1xi1>
    %462 = vector.broadcast %461 : vector<8x1xi1> to vector<8x64xi1>
    %463 = vector.shape_cast %458 : vector<1x64xf32> to vector<1x64xf32>
    %464 = vector.broadcast %463 : vector<1x64xf32> to vector<8x64xf32>
    %465 = arith.select %462, %464, %453 : vector<8x64xi1>, vector<8x64xf32>
    %466 = vector.extract_strided_slice %352 {offsets = [0, 1], sizes = [16, 1], strides = [1, 1]} : vector<16x8xf32> to vector<16x1xf32>
    %467 = vector.broadcast %466 : vector<16x1xf32> to vector<16x64xf32>
    %468 = arith.mulf %440, %467 : vector<16x64xf32>
    %cst_89 = arith.constant dense<0.000000e+00> : vector<64xf32>
    %469 = vector.multi_reduction <add>, %468, %cst_89 [0] : vector<16x64xf32> to vector<64xf32>
    %470 = vector.shape_cast %469 : vector<64xf32> to vector<1x64xf32>
    %c1_i32_90 = arith.constant 1 : i32
    %471 = vector.broadcast %c1_i32_90 : i32 to vector<8x1xi32>
    %472 = arith.cmpi eq, %9, %471 : vector<8x1xi32>
    %473 = vector.shape_cast %472 : vector<8x1xi1> to vector<8x1xi1>
    %474 = vector.broadcast %473 : vector<8x1xi1> to vector<8x64xi1>
    %475 = vector.shape_cast %470 : vector<1x64xf32> to vector<1x64xf32>
    %476 = vector.broadcast %475 : vector<1x64xf32> to vector<8x64xf32>
    %477 = arith.select %474, %476, %465 : vector<8x64xi1>, vector<8x64xf32>
    %478 = vector.extract_strided_slice %352 {offsets = [0, 2], sizes = [16, 1], strides = [1, 1]} : vector<16x8xf32> to vector<16x1xf32>
    %479 = vector.broadcast %478 : vector<16x1xf32> to vector<16x64xf32>
    %480 = arith.mulf %442, %479 : vector<16x64xf32>
    %cst_91 = arith.constant dense<0.000000e+00> : vector<64xf32>
    %481 = vector.multi_reduction <add>, %480, %cst_91 [0] : vector<16x64xf32> to vector<64xf32>
    %482 = vector.shape_cast %481 : vector<64xf32> to vector<1x64xf32>
    %c2_i32_92 = arith.constant 2 : i32
    %483 = vector.broadcast %c2_i32_92 : i32 to vector<8x1xi32>
    %484 = arith.cmpi eq, %9, %483 : vector<8x1xi32>
    %485 = vector.shape_cast %484 : vector<8x1xi1> to vector<8x1xi1>
    %486 = vector.broadcast %485 : vector<8x1xi1> to vector<8x64xi1>
    %487 = vector.shape_cast %482 : vector<1x64xf32> to vector<1x64xf32>
    %488 = vector.broadcast %487 : vector<1x64xf32> to vector<8x64xf32>
    %489 = arith.select %486, %488, %477 : vector<8x64xi1>, vector<8x64xf32>
    %490 = vector.extract_strided_slice %352 {offsets = [0, 3], sizes = [16, 1], strides = [1, 1]} : vector<16x8xf32> to vector<16x1xf32>
    %491 = vector.broadcast %490 : vector<16x1xf32> to vector<16x64xf32>
    %492 = arith.mulf %444, %491 : vector<16x64xf32>
    %cst_93 = arith.constant dense<0.000000e+00> : vector<64xf32>
    %493 = vector.multi_reduction <add>, %492, %cst_93 [0] : vector<16x64xf32> to vector<64xf32>
    %494 = vector.shape_cast %493 : vector<64xf32> to vector<1x64xf32>
    %c3_i32_94 = arith.constant 3 : i32
    %495 = vector.broadcast %c3_i32_94 : i32 to vector<8x1xi32>
    %496 = arith.cmpi eq, %9, %495 : vector<8x1xi32>
    %497 = vector.shape_cast %496 : vector<8x1xi1> to vector<8x1xi1>
    %498 = vector.broadcast %497 : vector<8x1xi1> to vector<8x64xi1>
    %499 = vector.shape_cast %494 : vector<1x64xf32> to vector<1x64xf32>
    %500 = vector.broadcast %499 : vector<1x64xf32> to vector<8x64xf32>
    %501 = arith.select %498, %500, %489 : vector<8x64xi1>, vector<8x64xf32>
    %502 = vector.extract_strided_slice %352 {offsets = [0, 4], sizes = [16, 1], strides = [1, 1]} : vector<16x8xf32> to vector<16x1xf32>
    %503 = vector.broadcast %502 : vector<16x1xf32> to vector<16x64xf32>
    %504 = arith.mulf %446, %503 : vector<16x64xf32>
    %cst_95 = arith.constant dense<0.000000e+00> : vector<64xf32>
    %505 = vector.multi_reduction <add>, %504, %cst_95 [0] : vector<16x64xf32> to vector<64xf32>
    %506 = vector.shape_cast %505 : vector<64xf32> to vector<1x64xf32>
    %c4_i32_96 = arith.constant 4 : i32
    %507 = vector.broadcast %c4_i32_96 : i32 to vector<8x1xi32>
    %508 = arith.cmpi eq, %9, %507 : vector<8x1xi32>
    %509 = vector.shape_cast %508 : vector<8x1xi1> to vector<8x1xi1>
    %510 = vector.broadcast %509 : vector<8x1xi1> to vector<8x64xi1>
    %511 = vector.shape_cast %506 : vector<1x64xf32> to vector<1x64xf32>
    %512 = vector.broadcast %511 : vector<1x64xf32> to vector<8x64xf32>
    %513 = arith.select %510, %512, %501 : vector<8x64xi1>, vector<8x64xf32>
    %514 = vector.extract_strided_slice %352 {offsets = [0, 5], sizes = [16, 1], strides = [1, 1]} : vector<16x8xf32> to vector<16x1xf32>
    %515 = vector.broadcast %514 : vector<16x1xf32> to vector<16x64xf32>
    %516 = arith.mulf %448, %515 : vector<16x64xf32>
    %cst_97 = arith.constant dense<0.000000e+00> : vector<64xf32>
    %517 = vector.multi_reduction <add>, %516, %cst_97 [0] : vector<16x64xf32> to vector<64xf32>
    %518 = vector.shape_cast %517 : vector<64xf32> to vector<1x64xf32>
    %c5_i32_98 = arith.constant 5 : i32
    %519 = vector.broadcast %c5_i32_98 : i32 to vector<8x1xi32>
    %520 = arith.cmpi eq, %9, %519 : vector<8x1xi32>
    %521 = vector.shape_cast %520 : vector<8x1xi1> to vector<8x1xi1>
    %522 = vector.broadcast %521 : vector<8x1xi1> to vector<8x64xi1>
    %523 = vector.shape_cast %518 : vector<1x64xf32> to vector<1x64xf32>
    %524 = vector.broadcast %523 : vector<1x64xf32> to vector<8x64xf32>
    %525 = arith.select %522, %524, %513 : vector<8x64xi1>, vector<8x64xf32>
    %526 = vector.extract_strided_slice %352 {offsets = [0, 6], sizes = [16, 1], strides = [1, 1]} : vector<16x8xf32> to vector<16x1xf32>
    %527 = vector.broadcast %526 : vector<16x1xf32> to vector<16x64xf32>
    %528 = arith.mulf %450, %527 : vector<16x64xf32>
    %cst_99 = arith.constant dense<0.000000e+00> : vector<64xf32>
    %529 = vector.multi_reduction <add>, %528, %cst_99 [0] : vector<16x64xf32> to vector<64xf32>
    %530 = vector.shape_cast %529 : vector<64xf32> to vector<1x64xf32>
    %c6_i32_100 = arith.constant 6 : i32
    %531 = vector.broadcast %c6_i32_100 : i32 to vector<8x1xi32>
    %532 = arith.cmpi eq, %9, %531 : vector<8x1xi32>
    %533 = vector.shape_cast %532 : vector<8x1xi1> to vector<8x1xi1>
    %534 = vector.broadcast %533 : vector<8x1xi1> to vector<8x64xi1>
    %535 = vector.shape_cast %530 : vector<1x64xf32> to vector<1x64xf32>
    %536 = vector.broadcast %535 : vector<1x64xf32> to vector<8x64xf32>
    %537 = arith.select %534, %536, %525 : vector<8x64xi1>, vector<8x64xf32>
    %538 = vector.extract_strided_slice %352 {offsets = [0, 7], sizes = [16, 1], strides = [1, 1]} : vector<16x8xf32> to vector<16x1xf32>
    %539 = vector.broadcast %538 : vector<16x1xf32> to vector<16x64xf32>
    %540 = arith.mulf %452, %539 : vector<16x64xf32>
    %cst_101 = arith.constant dense<0.000000e+00> : vector<64xf32>
    %541 = vector.multi_reduction <add>, %540, %cst_101 [0] : vector<16x64xf32> to vector<64xf32>
    %542 = vector.shape_cast %541 : vector<64xf32> to vector<1x64xf32>
    %c7_i32_102 = arith.constant 7 : i32
    %543 = vector.broadcast %c7_i32_102 : i32 to vector<8x1xi32>
    %544 = arith.cmpi eq, %9, %543 : vector<8x1xi32>
    %545 = vector.shape_cast %544 : vector<8x1xi1> to vector<8x1xi1>
    %546 = vector.broadcast %545 : vector<8x1xi1> to vector<8x64xi1>
    %547 = vector.shape_cast %542 : vector<1x64xf32> to vector<1x64xf32>
    %548 = vector.broadcast %547 : vector<1x64xf32> to vector<8x64xf32>
    %549 = arith.select %546, %548, %537 : vector<8x64xi1>, vector<8x64xf32>
    %c1_103 = arith.constant 1 : index
    %c0_104 = arith.constant 0 : index
    %c0_105 = arith.constant 0 : index
    %550 = vector.load %arg9[%c1_103, %c0_104, %c0_105] : memref<2x1x64xf32, #tpu.memory_space<vmem>>, vector<1x1x64xf32>
    %551 = vector.shape_cast %550 : vector<1x1x64xf32> to vector<1x64xf32>
    %552 = vector.broadcast %551 : vector<1x64xf32> to vector<8x64xf32>
    %553 = arith.mulf %552, %333 : vector<8x64xf32>
    %554 = arith.addf %549, %553 : vector<8x64xf32>
    %555 = arith.mulf %554, %362 : vector<8x64xf32>
    %c1_106 = arith.constant 1 : index
    %c0_107 = arith.constant 0 : index
    %c0_108 = arith.constant 0 : index
    %556 = vector.load %arg10[%c1_106, %c0_107, %c0_108] : memref<2x64x32xf32, #tpu.memory_space<vmem>>, vector<1x64x32xf32>
    %557 = vector.shape_cast %556 : vector<1x64x32xf32> to vector<64x32xf32>
    %cst_109 = arith.constant dense<0.000000e+00> : vector<8x32xf32>
    %558 = tpu.matmul %555, %557, %cst_109 {dimension_numbers = #tpu.dot_dimension_numbers<[1], [0], [0], [1], [0, 0, 1, 1], [], []>} : vector<8x64xf32>, vector<64x32xf32>, vector<8x32xf32> -> vector<8x32xf32>
    %559 = arith.addf %558, %284 : vector<8x32xf32>
    %560 = arith.mulf %559, %559 : vector<8x32xf32>
    %cst_110 = arith.constant dense<0.000000e+00> : vector<8xf32>
    %561 = vector.multi_reduction <add>, %560, %cst_110 [1] : vector<8x32xf32> to vector<8xf32>
    %562 = vector.shape_cast %561 : vector<8xf32> to vector<8x1xf32>
    %cst_111 = arith.constant 3.200000e+01 : f32
    %563 = vector.broadcast %cst_111 : f32 to vector<8x1xf32>
    %564 = arith.divf %562, %563 : vector<8x1xf32>
    %cst_112 = arith.constant 9.99999974E-6 : f32
    %565 = vector.broadcast %cst_112 : f32 to vector<8x1xf32>
    %566 = arith.addf %564, %565 : vector<8x1xf32>
    %567 = math.rsqrt %566 : vector<8x1xf32>
    %568 = vector.broadcast %567 : vector<8x1xf32> to vector<8x32xf32>
    %569 = arith.mulf %559, %568 : vector<8x32xf32>
    %c0_113 = arith.constant 0 : index
    %c0_114 = arith.constant 0 : index
    %570 = vector.load %arg11[%c0_113, %c0_114] : memref<32x256xf32, #tpu.memory_space<vmem>>, vector<32x256xf32>
    %cst_115 = arith.constant dense<0.000000e+00> : vector<8x256xf32>
    %571 = tpu.matmul %569, %570, %cst_115 {dimension_numbers = #tpu.dot_dimension_numbers<[1], [0], [0], [1], [0, 0, 1, 1], [], []>} : vector<8x32xf32>, vector<32x256xf32>, vector<8x256xf32> -> vector<8x256xf32>
    %c0_116 = arith.constant 0 : index
    %c0_117 = arith.constant 0 : index
    %572 = vector.load %arg12[%c0_116, %c0_117] : memref<8x256xf32, #tpu.memory_space<vmem>>, vector<8x256xf32>
    tpu.vector_store %arg12[%c0_116, %c0_117], %571 {strides = array<i32>} : memref<8x256xf32, #tpu.memory_space<vmem>>, vector<8x256xf32>,
    return
  }
}

</mosaic_0001>

<llo_original>
// kernel: mamba_forward.1
$region0: #{mamba_forward.1}
  #allocation0 [shape = 'u32[]', space=smem, size = 0x4, offset = 0x4, fixed_abs, tag = 'smem constant byte address 0x4 - core index']
  #allocation1 [shape = 'u32[144,128]{1,0:T(1,128)}', space=vmem, size = 0x12000, scoped, tag = 'internal scratch']
  %s0 = inlined_call_operand.vmem [shape: s32[8,1], index: 0, kind: input, shape index: {}]
  %s1 = inlined_call_operand.vmem [shape: f32[256,32], index: 1, kind: input, shape index: {}]
  %s2 = inlined_call_operand.vmem [shape: f32[2,32,128], index: 2, kind: input, shape index: {}]
  %s3 = inlined_call_operand.vmem [shape: f32[32,8], index: 3, kind: input, shape index: {}]
  %s4 = inlined_call_operand.vmem [shape: f32[2,4,64], index: 4, kind: input, shape index: {}]
  %s5 = inlined_call_operand.vmem [shape: f32[2,1,64], index: 5, kind: input, shape index: {}]
  %s6 = inlined_call_operand.vmem [shape: f32[2,64,128], index: 6, kind: input, shape index: {}]
  %s7 = inlined_call_operand.vmem [shape: f32[2,1,64], index: 7, kind: input, shape index: {}]
  %s8 = inlined_call_operand.vmem [shape: f32[2,16,64], index: 8, kind: input, shape index: {}]
  %s9 = inlined_call_operand.vmem [shape: f32[2,1,64], index: 9, kind: input, shape index: {}]
  %s10 = inlined_call_operand.vmem [shape: f32[2,64,32], index: 10, kind: input, shape index: {}]
  %s11 = inlined_call_operand.vmem [shape: f32[32,256], index: 11, kind: input, shape index: {}]
  %s12 = inlined_call_operand.hbm [shape: f32[8,256], index: 12, kind: output, shape index: {}]
  %s13 = sld [smem:[#allocation0]]
  $region58: #{mamba_forward.1} parent=0
    _
  %s15 = ssub.s32 1, %s13
  %s16 = scalar_select 0, %s15, %s13
  $region1: #{mamba_forward.1} parent=0
    #allocation2 [shape = 'u8[8192]{0}', space=vmem, size = 0x2000, scoped, tag = 'output window, operand 0, single buffered']
    #allocation3 [shape = 's32[1]{0}', space=sflag, size = 0x4, scoped, tag = 'scoped memory for mamba_forward.1']
    %17 = vsyncpa [#allocation3], 0
    // Predicated region
    $region2: #{mamba_forward.1} parent=1 // pred_check
      _
    $region3: #{mamba_forward.1} parent=1 // pred_check_branch
      %19 = sbr.rel (0) target = $region5
    $region4: #{mamba_forward.1} parent=1 // pred_region
      _
    $region5: #{mamba_forward.1} parent=1 // pred_fallthru
      _
    // Predicated region
    $region6: #{mamba_forward.1} parent=1 // pred_check
      _
    $region7: #{mamba_forward.1} parent=1 // pred_check_branch
      %21 = sbr.rel (0) target = $region9
    $region8: #{mamba_forward.1} parent=1 // pred_region
      _
    $region9: #{mamba_forward.1} parent=1 // pred_fallthru
      _
    // Predicated region
    $region10: #{mamba_forward.1} parent=1 // pred_check
      _
    $region11: #{mamba_forward.1} parent=1 // pred_check_branch
      %23 = sbr.rel (0) target = $region13
    $region12: #{mamba_forward.1} parent=1 // pred_region
      _
    $region13: #{mamba_forward.1} parent=1 // pred_fallthru
      _
    // Predicated region
    $region14: #{mamba_forward.1} parent=1 // pred_check
      _
    $region15: #{mamba_forward.1} parent=1 // pred_check_branch
      %25 = sbr.rel (0) target = $region17
    $region16: #{mamba_forward.1} parent=1 // pred_region
      _
    $region17: #{mamba_forward.1} parent=1 // pred_fallthru
      _
    // Predicated region
    $region18: #{mamba_forward.1} parent=1 // pred_check
      _
    $region19: #{mamba_forward.1} parent=1 // pred_check_branch
      %27 = sbr.rel (0) target = $region21
    $region20: #{mamba_forward.1} parent=1 // pred_region
      _
    $region21: #{mamba_forward.1} parent=1 // pred_fallthru
      _
    // Predicated region
    $region22: #{mamba_forward.1} parent=1 // pred_check
      _
    $region23: #{mamba_forward.1} parent=1 // pred_check_branch
      %29 = sbr.rel (0) target = $region25
    $region24: #{mamba_forward.1} parent=1 // pred_region
      _
    $region25: #{mamba_forward.1} parent=1 // pred_fallthru
      _
    // Predicated region
    $region26: #{mamba_forward.1} parent=1 // pred_check
      _
    $region27: #{mamba_forward.1} parent=1 // pred_check_branch
      %31 = sbr.rel (0) target = $region29
    $region28: #{mamba_forward.1} parent=1 // pred_region
      _
    $region29: #{mamba_forward.1} parent=1 // pred_fallthru
      _
    // Predicated region
    $region30: #{mamba_forward.1} parent=1 // pred_check
      _
    $region31: #{mamba_forward.1} parent=1 // pred_check_branch
      %33 = sbr.rel (0) target = $region33
    $region32: #{mamba_forward.1} parent=1 // pred_region
      _
    $region33: #{mamba_forward.1} parent=1 // pred_fallthru
      _
    // Predicated region
    $region34: #{mamba_forward.1} parent=1 // pred_check
      _
    $region35: #{mamba_forward.1} parent=1 // pred_check_branch
      %35 = sbr.rel (0) target = $region37
    $region36: #{mamba_forward.1} parent=1 // pred_region
      _
    $region37: #{mamba_forward.1} parent=1 // pred_fallthru
      _
    // Predicated region
    $region38: #{mamba_forward.1} parent=1 // pred_check
      _
    $region39: #{mamba_forward.1} parent=1 // pred_check_branch
      %37 = sbr.rel (0) target = $region41
    $region40: #{mamba_forward.1} parent=1 // pred_region
      _
    $region41: #{mamba_forward.1} parent=1 // pred_fallthru
      _
    // Predicated region
    $region42: #{mamba_forward.1} parent=1 // pred_check
      _
    $region43: #{mamba_forward.1} parent=1 // pred_check_branch
      %39 = sbr.rel (0) target = $region45
    $region44: #{mamba_forward.1} parent=1 // pred_region
      _
    $region45: #{mamba_forward.1} parent=1 // pred_fallthru
      _
    // Predicated region
    $region46: #{mamba_forward.1} parent=1 // pred_check
      _
    $region47: #{mamba_forward.1} parent=1 // pred_check_branch
      %41 = sbr.rel (0) target = $region49
    $region48: #{mamba_forward.1} parent=1 // pred_region
      _
    $region49: #{mamba_forward.1} parent=1 // pred_fallthru
      _
    %v42 = vld [vmem:[%s0] sm:$0xff]
    %v43 = vlaneseq
    %v44 = vand.u32 %v43, 127
    %v45 = vadd.s32 %v44, 128
    %46 = vset.pattern.permute.xlu0 0
    %47 = vperm.xlu0 %46, %v42
    %v48 = vpop.permute.xlu0 %47
    %vm49 = vcmp.eq.s32.totalorder %v44, %v48
    %vm50 = vcmp.eq.s32.totalorder %v45, %v48
    %v51 = vsel %vm49, 1, 0
    %v52 = vsel %vm50, 1, 0
    %v53 = vcvt.s32.f32 %v51
    %v54 = vcvt.s32.f32 %v52
    %v55 = vld [vmem:[%s1] sm:$0xff]
    %v56 = vld [vmem:[%s1 + $0x8] sm:$0xff]
    %v57 = vld [vmem:[%s1 + $0x10] sm:$0xff]
    %v58 = vld [vmem:[%s1 + $0x18] sm:$0xff]
    %v59 = vld [vmem:[%s1 + $0x20] sm:$0xff]
    %v60 = vld [vmem:[%s1 + $0x28] sm:$0xff]
    %v61 = vld [vmem:[%s1 + $0x30] sm:$0xff]
    %v62 = vld [vmem:[%s1 + $0x38] sm:$0xff]
    %v63 = vld [vmem:[%s1 + $0x40] sm:$0xff]
    %v64 = vld [vmem:[%s1 + $0x48] sm:$0xff]
    %v65 = vld [vmem:[%s1 + $0x50] sm:$0xff]
    %v66 = vld [vmem:[%s1 + $0x58] sm:$0xff]
    %v67 = vld [vmem:[%s1 + $0x60] sm:$0xff]
    %v68 = vld [vmem:[%s1 + $0x68] sm:$0xff]
    %v69 = vld [vmem:[%s1 + $0x70] sm:$0xff]
    %v70 = vld [vmem:[%s1 + $0x78] sm:$0xff]
    %v71 = vld [vmem:[%s1 + $0x80] sm:$0xff]
    %v72 = vld [vmem:[%s1 + $0x88] sm:$0xff]
    %v73 = vld [vmem:[%s1 + $0x90] sm:$0xff]
    %v74 = vld [vmem:[%s1 + $0x98] sm:$0xff]
    %v75 = vld [vmem:[%s1 + $0xa0] sm:$0xff]
    %v76 = vld [vmem:[%s1 + $0xa8] sm:$0xff]
    %v77 = vld [vmem:[%s1 + $0xb0] sm:$0xff]
    %v78 = vld [vmem:[%s1 + $0xb8] sm:$0xff]
    %v79 = vld [vmem:[%s1 + $0xc0] sm:$0xff]
    %v80 = vld [vmem:[%s1 + $0xc8] sm:$0xff]
    %v81 = vld [vmem:[%s1 + $0xd0] sm:$0xff]
    %v82 = vld [vmem:[%s1 + $0xd8] sm:$0xff]
    %v83 = vld [vmem:[%s1 + $0xe0] sm:$0xff]
    %v84 = vld [vmem:[%s1 + $0xe8] sm:$0xff]
    %v85 = vld [vmem:[%s1 + $0xf0] sm:$0xff]
    %v86 = vld [vmem:[%s1 + $0xf8] sm:$0xff]
    %87 = vmatprep.subr.mxu0 0.0
    %88 = vmatpush1.msra.mxu0 %v55
    %89 = vmatprep.subr.mxu0 0.0
    %90 = vmatpush1.msra.mxu0 %v56
    %91 = vmatprep.subr.mxu0 0.0
    %92 = vmatpush1.msra.mxu0 %v57
    %93 = vmatprep.subr.mxu0 0.0
    %94 = vmatpush1.msra.mxu0 %v58
    %95 = vmatprep.subr.mxu0 0.0
    %96 = vmatpush1.msra.mxu0 %v59
    %97 = vmatprep.subr.mxu0 0.0
    %98 = vmatpush1.msra.mxu0 %v60
    %99 = vmatprep.subr.mxu0 0.0
    %100 = vmatpush1.msra.mxu0 %v61
    %101 = vmatprep.subr.mxu0 0.0
    %102 = vmatpush1.msra.mxu0 %v62
    %103 = vmatprep.subr.mxu0 0.0
    %104 = vmatpush1.msra.mxu0 %v63
    %105 = vmatprep.subr.mxu0 0.0
    %106 = vmatpush1.msra.mxu0 %v64
    %107 = vmatprep.subr.mxu0 0.0
    %108 = vmatpush1.msra.mxu0 %v65
    %109 = vmatprep.subr.mxu0 0.0
    %110 = vmatpush1.msra.mxu0 %v66
    %111 = vmatprep.subr.mxu0 0.0
    %112 = vmatpush1.msra.mxu0 %v67
    %113 = vmatprep.subr.mxu0 0.0
    %114 = vmatpush1.msra.mxu0 %v68
    %115 = vmatprep.subr.mxu0 0.0
    %116 = vmatpush1.msra.mxu0 %v69
    %117 = vmatprep.subr.mxu0 0.0
    %118 = vmatpush1.msra.mxu0 %v70
    %119 = vmatprep.subr.mxu0 0.0
    %120 = vmatpush1.msra.mxu0 %v71
    %121 = vmatprep.subr.mxu0 0.0
    %122 = vmatpush1.msra.mxu0 %v72
    %123 = vmatprep.subr.mxu0 0.0
    %124 = vmatpush1.msra.mxu0 %v73
    %125 = vmatprep.subr.mxu0 0.0
    %126 = vmatpush1.msra.mxu0 %v74
    %127 = vmatprep.subr.mxu0 0.0
    %128 = vmatpush1.msra.mxu0 %v75
    %129 = vmatprep.subr.mxu0 0.0
    %130 = vmatpush1.msra.mxu0 %v76
    %131 = vmatprep.subr.mxu0 0.0
    %132 = vmatpush1.msra.mxu0 %v77
    %133 = vmatprep.subr.mxu0 0.0
    %134 = vmatpush1.msra.mxu0 %v78
    %135 = vmatprep.subr.mxu0 0.0
    %136 = vmatpush1.msra.mxu0 %v79
    %137 = vmatprep.subr.mxu0 0.0
    %138 = vmatpush1.msra.mxu0 %v80
    %139 = vmatprep.subr.mxu0 0.0
    %140 = vmatpush1.msra.mxu0 %v81
    %141 = vmatprep.subr.mxu0 0.0
    %142 = vmatpush1.msra.mxu0 %v82
    %143 = vmatprep.subr.mxu0 0.0
    %144 = vmatpush1.msra.mxu0 %v83
    %145 = vmatprep.subr.mxu0 0.0
    %146 = vmatpush1.msra.mxu0 %v84
    %147 = vmatprep.subr.mxu0 0.0
    %148 = vmatpush1.msra.mxu0 %v85
    %149 = vmatprep.subr.mxu0 0.0
    %150 = vmatpush1.msra.mxu0 %v86
    %151 = vmatprep.mubr.f32.mxu0 %v54
    %152 = vmatmul.mubr.f32.gmra.mrb[0].mxu0 %v53
    %v153 = vpop.f32.mrb[0].mxu0
    %v154 = vadd.f32 0.0, %v153
    %v155 = vpop.f32.mrb[0].mxu0
    %156 = vdwg.mxu0
    %v157 = vld [vmem:[%s3] sm:$0xff]
    %v158 = vld [vmem:[%s3 + $0x8] sm:$0xff]
    %v159 = vld [vmem:[%s3 + $0x10] sm:$0xff]
    %v160 = vld [vmem:[%s3 + $0x18] sm:$0xff]
    %v161 = vlaneseq
    %v162 = vshrl.u32 %v161, 7
    %v163 = vmul.f32 %v154, %v154
    %vm164 = vcmask 261120
    %v165 = vsel %vm164, %v163, 0.0
    %166 = vadd.xlane.f32.xlu0 %v165
    %v167 = vpop.xlane.xlu0 %166
    %v168 = vrcp.pop 32.0
    %v169 = vmul.f32 %v167, %v168
    %v170 = vadd.f32 %v169, 1e-05
    %v171 = vrsqrt.pop %v170
    %v172 = vmul.f32 %v154, %v171
    %v173 = vld [vmem:[%s2] sm:$0xff]
    %v174 = vld [vmem:[%s2 + $0x8] sm:$0xff]
    %v175 = vld [vmem:[%s2 + $0x10] sm:$0xff]
    %v176 = vld [vmem:[%s2 + $0x18] sm:$0xff]
    %v178 = vsel %vm164, %v172, 0
    %180 = vmatprep.subr.mxu0 0.0
    %181 = vmatpush1.msra.mxu0 %v173
    %182 = vmatprep.subr.mxu0 0.0
    %183 = vmatpush1.msra.mxu0 %v174
    %184 = vmatprep.subr.mxu0 0.0
    %185 = vmatpush1.msra.mxu0 %v175
    %186 = vmatprep.subr.mxu0 0.0
    %187 = vmatpush1.msra.mxu0 %v176
    %188 = vmatprep.subr.mxu0 0.0
    %189 = vmatpush1.msra.mxu0 0.0
    %190 = vmatprep.subr.mxu0 0.0
    %191 = vmatpush1.msra.mxu0 0.0
    %192 = vmatprep.subr.mxu0 0.0
    %193 = vmatpush1.msra.mxu0 0.0
    %194 = vmatprep.subr.mxu0 0.0
    %195 = vmatpush1.msra.mxu0 0.0
    %196 = vmatprep.subr.mxu0 0.0
    %197 = vmatpush1.msra.mxu0 0.0
    %198 = vmatprep.subr.mxu0 0.0
    %199 = vmatpush1.msra.mxu0 0.0
    %200 = vmatprep.subr.mxu0 0.0
    %201 = vmatpush1.msra.mxu0 0.0
    %202 = vmatprep.subr.mxu0 0.0
    %203 = vmatpush1.msra.mxu0 0.0
    %204 = vmatprep.subr.mxu0 0.0
    %205 = vmatpush1.msra.mxu0 0.0
    %206 = vmatprep.subr.mxu0 0.0
    %207 = vmatpush1.msra.mxu0 0.0
    %208 = vmatprep.subr.mxu0 0.0
    %209 = vmatpush1.msra.mxu0 0.0
    %210 = vmatprep.subr.mxu0 0.0
    %211 = vmatpush1.msra.mxu0 0.0
    %212 = vmatprep.subr.mxu0 0.0
    %213 = vmatpush1.msra.mxu0 0.0
    %214 = vmatprep.subr.mxu0 0.0
    %215 = vmatpush1.msra.mxu0 0.0
    %216 = vmatprep.subr.mxu0 0.0
    %217 = vmatpush1.msra.mxu0 0.0
    %218 = vmatprep.subr.mxu0 0.0
    %219 = vmatpush1.msra.mxu0 0.0
    %220 = vmatprep.subr.mxu0 0.0
    %221 = vmatpush1.msra.mxu0 0.0
    %222 = vmatprep.subr.mxu0 0.0
    %223 = vmatpush1.msra.mxu0 0.0
    %224 = vmatprep.subr.mxu0 0.0
    %225 = vmatpush1.msra.mxu0 0.0
    %226 = vmatprep.subr.mxu0 0.0
    %227 = vmatpush1.msra.mxu0 0.0
    %228 = vmatprep.subr.mxu0 0.0
    %229 = vmatpush1.msra.mxu0 0.0
    %230 = vmatprep.subr.mxu0 0.0
    %231 = vmatpush1.msra.mxu0 0.0
    %232 = vmatprep.subr.mxu0 0.0
    %233 = vmatpush1.msra.mxu0 0.0
    %234 = vmatprep.subr.mxu0 0.0
    %235 = vmatpush1.msra.mxu0 0.0
    %236 = vmatprep.subr.mxu0 0.0
    %237 = vmatpush1.msra.mxu0 0.0
    %238 = vmatprep.subr.mxu0 0.0
    %239 = vmatpush1.msra.mxu0 0.0
    %240 = vmatprep.subr.mxu0 0.0
    %241 = vmatpush1.msra.mxu0 0.0
    %242 = vmatprep.subr.mxu0 0.0
    %243 = vmatpush1.msra.mxu0 0.0
    %244 = vmatprep.mubr.f32.mxu0 0.0
    %245 = vmatmul.mubr.f32.gmra.mrb[0].mxu0 %v178
    %v246 = vpop.f32.mrb[0].mxu0
    %v247 = vadd.f32 0.0, %v246
    %v248 = vpop.f32.mrb[0].mxu0
    %249 = vdwg.mxu0
    %vm250 = vcmask 64512
    %v252 = vsel %vm250, %v157, 0
    %v255 = vsel %vm250, %v158, 0
    %v258 = vsel %vm250, %v159, 0
    %v261 = vsel %vm250, %v160, 0
    %263 = vmatprep.subr.mxu0 0.0
    %264 = vmatpush1.msra.mxu0 %v247
    %265 = vmatprep.subr.mxu0 0.0
    %266 = vmatpush1.msra.mxu0 0.0
    %267 = vmatprep.subr.mxu0 0.0
    %268 = vmatpush1.msra.mxu0 0.0
    %269 = vmatprep.subr.mxu0 0.0
    %270 = vmatpush1.msra.mxu0 0.0
    %271 = vmatprep.subr.mxu0 0.0
    %272 = vmatpush1.msra.mxu0 0.0
    %273 = vmatprep.subr.mxu0 0.0
    %274 = vmatpush1.msra.mxu0 0.0
    %275 = vmatprep.subr.mxu0 0.0
    %276 = vmatpush1.msra.mxu0 0.0
    %277 = vmatprep.subr.mxu0 0.0
    %278 = vmatpush1.msra.mxu0 0.0
    %279 = vmatprep.subr.mxu0 0.0
    %280 = vmatpush1.msra.mxu0 0.0
    %281 = vmatprep.subr.mxu0 0.0
    %282 = vmatpush1.msra.mxu0 0.0
    %283 = vmatprep.subr.mxu0 0.0
    %284 = vmatpush1.msra.mxu0 0.0
    %285 = vmatprep.subr.mxu0 0.0
    %286 = vmatpush1.msra.mxu0 0.0
    %287 = vmatprep.subr.mxu0 0.0
    %288 = vmatpush1.msra.mxu0 0.0
    %289 = vmatprep.subr.mxu0 0.0
    %290 = vmatpush1.msra.mxu0 0.0
    %291 = vmatprep.subr.mxu0 0.0
    %292 = vmatpush1.msra.mxu0 0.0
    %293 = vmatprep.subr.mxu0 0.0
    %294 = vmatpush1.msra.mxu0 0.0
    %295 = vmatprep.subr.mxu0 0.0
    %296 = vmatpush1.msra.mxu0 0.0
    %297 = vmatprep.subr.mxu0 0.0
    %298 = vmatpush1.msra.mxu0 0.0
    %299 = vmatprep.subr.mxu0 0.0
    %300 = vmatpush1.msra.mxu0 0.0
    %301 = vmatprep.subr.mxu0 0.0
    %302 = vmatpush1.msra.mxu0 0.0
    %303 = vmatprep.subr.mxu0 0.0
    %304 = vmatpush1.msra.mxu0 0.0
    %305 = vmatprep.subr.mxu0 0.0
    %306 = vmatpush1.msra.mxu0 0.0
    %307 = vmatprep.subr.mxu0 0.0
    %308 = vmatpush1.msra.mxu0 0.0
    %309 = vmatprep.subr.mxu0 0.0
    %310 = vmatpush1.msra.mxu0 0.0
    %311 = vmatprep.subr.mxu0 0.0
    %312 = vmatpush1.msra.mxu0 0.0
    %313 = vmatprep.subr.mxu0 0.0
    %314 = vmatpush1.msra.mxu0 0.0
    %315 = vmatprep.subr.mxu0 0.0
    %316 = vmatpush1.msra.mxu0 0.0
    %317 = vmatprep.subr.mxu0 0.0
    %318 = vmatpush1.msra.mxu0 0.0
    %319 = vmatprep.subr.mxu0 0.0
    %320 = vmatpush1.msra.mxu0 0.0
    %321 = vmatprep.subr.mxu0 0.0
    %322 = vmatpush1.msra.mxu0 0.0
    %323 = vmatprep.subr.mxu0 0.0
    %324 = vmatpush1.msra.mxu0 0.0
    %325 = vmatprep.subr.mxu0 0.0
    %326 = vmatpush1.msra.mxu0 0.0
    %327 = vmatprep.mubr.f32.mxu0 0.0
    %328 = vmatmul.mubr.f32.gmra.mrb[0].mxu0 %v252
    %v329 = vpop.f32.mrb[0].mxu0
    %v330 = vadd.f32 0.0, %v329
    %v331 = vpop.f32.mrb[0].mxu0
    %332 = vmatprep.mubr.f32.mxu0 0.0
    %333 = vmatmul.mubr.f32.gmra.mrb[0].mxu0 %v255
    %v334 = vpop.f32.mrb[0].mxu0
    %v335 = vadd.f32 0.0, %v334
    %v336 = vpop.f32.mrb[0].mxu0
    %337 = vmatprep.mubr.f32.mxu0 0.0
    %338 = vmatmul.mubr.f32.gmra.mrb[0].mxu0 %v258
    %v339 = vpop.f32.mrb[0].mxu0
    %v340 = vadd.f32 0.0, %v339
    %v341 = vpop.f32.mrb[0].mxu0
    %342 = vmatprep.mubr.f32.mxu0 0.0
    %343 = vmatmul.mubr.f32.gmra.mrb[0].mxu0 %v261
    %v344 = vpop.f32.mrb[0].mxu0
    %v345 = vadd.f32 0.0, %v344
    %v346 = vpop.f32.mrb[0].mxu0
    %347 = vdwg.mxu0
    %v348 = vld [vmem:[%s4] sm:$0xf]
    %v349 = vld [vmem:[%s5] sm:$0x1]
    %v350 = vlaneseq
    %v351 = vshrl.u32 %v350, 7
    %v352 = vsub.s32 0, %v351
    %v353 = vrot.slane %v348, %v352
    %v354 = vmul.f32 %v330, %v353
    %v356 = vlaneseq
    %v357 = vshrl.u32 %v356, 7
    %v358 = vsub.s32 0, %v357
    %v359 = vrot.slane %v349, %v358
    %v361 = vadd.f32 %v359, %v354
    %v362 = vlaneseq
    %v363 = vshrl.u32 %v362, 7
    %v364 = vsub.s32 1, %v363
    %v365 = vrot.slane %v348, %v364
    %v366 = vmul.f32 %v335, %v365
    %v367 = vadd.f32 %v361, %v366
    %v368 = vlaneseq
    %v369 = vshrl.u32 %v368, 7
    %v370 = vsub.s32 2, %v369
    %v371 = vrot.slane %v348, %v370
    %v372 = vmul.f32 %v340, %v371
    %v373 = vadd.f32 %v367, %v372
    %v374 = vlaneseq
    %v375 = vshrl.u32 %v374, 7
    %v376 = vsub.s32 3, %v375
    %v377 = vrot.slane %v348, %v376
    %v378 = vmul.f32 %v345, %v377
    %v379 = vadd.f32 %v373, %v378
    %v380 = vsub.f32 0.0, %v379
    %v381 = vmul.f32 %v380, 1.442695
    %v382 = vpow.pop %v381
    %v383 = vadd.f32 %v382, 1.0
    %v384 = vrcp.pop %v383
    %v385 = vmul.f32 1.0, %v384
    %v386 = vmul.f32 %v379, %v385
    %v387 = vld [vmem:[%s6] sm:$0xff]
    %v388 = vld [vmem:[%s6 + $0x8] sm:$0xff]
    %v389 = vld [vmem:[%s6 + $0x10] sm:$0xff]
    %v390 = vld [vmem:[%s6 + $0x18] sm:$0xff]
    %v391 = vld [vmem:[%s6 + $0x20] sm:$0xff]
    %v392 = vld [vmem:[%s6 + $0x28] sm:$0xff]
    %v393 = vld [vmem:[%s6 + $0x30] sm:$0xff]
    %v394 = vld [vmem:[%s6 + $0x38] sm:$0xff]
    %vm395 = vcmask 523264
    %v397 = vsel %vm395, %v386, 0
    %399 = vmatprep.subr.mxu0 0.0
    %400 = vmatpush1.msra.mxu0 %v387
    %401 = vmatprep.subr.mxu0 0.0
    %402 = vmatpush1.msra.mxu0 %v388
    %403 = vmatprep.subr.mxu0 0.0
    %404 = vmatpush1.msra.mxu0 %v389
    %405 = vmatprep.subr.mxu0 0.0
    %406 = vmatpush1.msra.mxu0 %v390
    %407 = vmatprep.subr.mxu0 0.0
    %408 = vmatpush1.msra.mxu0 %v391
    %409 = vmatprep.subr.mxu0 0.0
    %410 = vmatpush1.msra.mxu0 %v392
    %411 = vmatprep.subr.mxu0 0.0
    %412 = vmatpush1.msra.mxu0 %v393
    %413 = vmatprep.subr.mxu0 0.0
    %414 = vmatpush1.msra.mxu0 %v394
    %415 = vmatprep.subr.mxu0 0.0
    %416 = vmatpush1.msra.mxu0 0.0
    %417 = vmatprep.subr.mxu0 0.0
    %418 = vmatpush1.msra.mxu0 0.0
    %419 = vmatprep.subr.mxu0 0.0
    %420 = vmatpush1.msra.mxu0 0.0
    %421 = vmatprep.subr.mxu0 0.0
    %422 = vmatpush1.msra.mxu0 0.0
    %423 = vmatprep.subr.mxu0 0.0
    %424 = vmatpush1.msra.mxu0 0.0
    %425 = vmatprep.subr.mxu0 0.0
    %426 = vmatpush1.msra.mxu0 0.0
    %427 = vmatprep.subr.mxu0 0.0
    %428 = vmatpush1.msra.mxu0 0.0
    %429 = vmatprep.subr.mxu0 0.0
    %430 = vmatpush1.msra.mxu0 0.0
    %431 = vmatprep.subr.mxu0 0.0
    %432 = vmatpush1.msra.mxu0 0.0
    %433 = vmatprep.subr.mxu0 0.0
    %434 = vmatpush1.msra.mxu0 0.0
    %435 = vmatprep.subr.mxu0 0.0
    %436 = vmatpush1.msra.mxu0 0.0
    %437 = vmatprep.subr.mxu0 0.0
    %438 = vmatpush1.msra.mxu0 0.0
    %439 = vmatprep.subr.mxu0 0.0
    %440 = vmatpush1.msra.mxu0 0.0
    %441 = vmatprep.subr.mxu0 0.0
    %442 = vmatpush1.msra.mxu0 0.0
    %443 = vmatprep.subr.mxu0 0.0
    %444 = vmatpush1.msra.mxu0 0.0
    %445 = vmatprep.subr.mxu0 0.0
    %446 = vmatpush1.msra.mxu0 0.0
    %447 = vmatprep.subr.mxu0 0.0
    %448 = vmatpush1.msra.mxu0 0.0
    %449 = vmatprep.subr.mxu0 0.0
    %450 = vmatpush1.msra.mxu0 0.0
    %451 = vmatprep.subr.mxu0 0.0
    %452 = vmatpush1.msra.mxu0 0.0
    %453 = vmatprep.subr.mxu0 0.0
    %454 = vmatpush1.msra.mxu0 0.0
    %455 = vmatprep.subr.mxu0 0.0
    %456 = vmatpush1.msra.mxu0 0.0
    %457 = vmatprep.subr.mxu0 0.0
    %458 = vmatpush1.msra.mxu0 0.0
    %459 = vmatprep.subr.mxu0 0.0
    %460 = vmatpush1.msra.mxu0 0.0
    %461 = vmatprep.subr.mxu0 0.0
    %462 = vmatpush1.msra.mxu0 0.0
    %463 = vmatprep.mubr.f32.mxu0 0.0
    %464 = vmatmul.mubr.f32.gmra.mrb[0].mxu0 %v397
    %v465 = vpop.f32.mrb[0].mxu0
    %v466 = vadd.f32 0.0, %v465
    %v467 = vpop.f32.mrb[0].mxu0
    %468 = vdwg.mxu0
    %v469 = vld [vmem:[%s7] sm:$0x1]
    %v471 = vlaneseq
    %v472 = vshrl.u32 %v471, 7
    %v473 = vsub.s32 0, %v472
    %v474 = vrot.slane %v469, %v473
    %475 = vrot.lane.b32.xlu0 %v474, 64
    %v476 = vpop.permute.xlu0 %475
    %v478 = vadd.f32 %v466, %v476
    %v479 = vmax.f32 %v478, 0.0
    %v480 = vand.u32 2147483647, %v478
    %v481 = vsub.f32 0.0, %v480
    %v482 = vmul.f32 %v481, 1.442695
    %v483 = vpow.pop %v482
    %v484 = vadd.f32 %v483, 1.0
    %v485 = vlog2.pop %v484
    %v486 = vmul.f32 %v485, 0.6931472
    %v487 = vmul.f32 -0.5, %v483
    %v488 = vadd.f32 %v487, 1.0
    %v489 = vmul.f32 %v488, %v483
    %v490 = vand.u32 2147483647, %v483
    %vm491 = vcmp.lt.f32.partialorder %v490, 0.0004427343
    %v492 = vsel %vm491, %v489, %v486
    %v493 = vadd.f32 %v479, %v492
    %494 = vxpose.xlu0.b32.start [1/16] %v466, 128
    %495 = vxpose.xlu0.b32.cont [2/16] 0.0, 128
    %496 = vxpose.xlu0.b32.cont [3/16] 0.0, 128
    %497 = vxpose.xlu0.b32.cont [4/16] 0.0, 128
    %498 = vxpose.xlu0.b32.cont [5/16] 0.0, 128
    %499 = vxpose.xlu0.b32.cont [6/16] 0.0, 128
    %500 = vxpose.xlu0.b32.cont [7/16] 0.0, 128
    %501 = vxpose.xlu0.b32.cont [8/16] 0.0, 128
    %502 = vxpose.xlu0.b32.cont [9/16] 0.0, 128
    %503 = vxpose.xlu0.b32.cont [10/16] 0.0, 128
    %504 = vxpose.xlu0.b32.cont [11/16] 0.0, 128
    %505 = vxpose.xlu0.b32.cont [12/16] 0.0, 128
    %506 = vxpose.xlu0.b32.cont [13/16] 0.0, 128
    %507 = vxpose.xlu0.b32.cont [14/16] 0.0, 128
    %508 = vxpose.xlu0.b32.cont [15/16] 0.0, 128
    %509 = vxpose.xlu0.b32.end [16/16] 0.0, 128
    %v510 = vpop.trf.xlu0
    %v511 = vpop.trf.xlu0
    %v512 = vpop.trf.xlu0
    %v513 = vpop.trf.xlu0
    %v514 = vpop.trf.xlu0
    %v515 = vpop.trf.xlu0
    %v516 = vpop.trf.xlu0
    %v517 = vpop.trf.xlu0
    %v518 = vpop.trf.xlu0
    %v519 = vpop.trf.xlu0
    %v520 = vpop.trf.xlu0
    %v521 = vpop.trf.xlu0
    %v522 = vpop.trf.xlu0
    %v523 = vpop.trf.xlu0
    %v524 = vpop.trf.xlu0
    %v525 = vpop.trf.xlu0
    %v526 = vld [vmem:[%s8] sm:$0xff]
    %v527 = vld [vmem:[%s8 + $0x8] sm:$0xff]
    %v528 = vsub.f32 0.0, %v247
    %v529 = vmul.f32 %v528, 1.442695
    %v530 = vpow.pop %v529
    %v531 = vadd.f32 %v530, 1.0
    %v532 = vrcp.pop %v531
    %v533 = vmul.f32 1.0, %v532
    %v534 = vmul.f32 %v247, %v533
    %535 = vrot.lane.b32.xlu0 %v386, 64
    %v536 = vpop.permute.xlu0 %535
    %v538 = vmul.f32 %v493, %v536
    %v539 = vlaneseq
    %v540 = vshrl.u32 %v539, 7
    %v541 = vsub.s32 0, %v540
    %v542 = vrot.slane %v493, %v541
    %545 = vrot.lane.b32.xlu0 %v526, 64
    %v546 = vpop.permute.xlu0 %545
    %547 = vrot.lane.b32.xlu0 %v527, 64
    %v548 = vpop.permute.xlu0 %547
    %v551 = vmul.f32 %v542, %v546
    %v552 = vmul.f32 %v542, %v548
    %v553 = vmul.f32 %v551, 1.442695
    %v554 = vpow.pop %v553
    %v555 = vmul.f32 %v552, 1.442695
    %v556 = vpow.pop %v555
    %v557 = vlaneseq
    %v558 = vshrl.u32 %v557, 7
    %v559 = vsub.s32 0, %v558
    %v560 = vrot.slane %v538, %v559
    %562 = vset.pattern.permute.xlu0 0
    %563 = vperm.xlu0 %562, %v510
    %v564 = vpop.permute.xlu0 %563
    %567 = vset.pattern.permute.xlu0 0
    %568 = vperm.xlu0 %567, %v511
    %v569 = vpop.permute.xlu0 %568
    %v571 = vmul.f32 %v560, %v564
    %v572 = vmul.f32 %v560, %v569
    %v573 = vlaneseq
    %v574 = vshrl.u32 %v573, 7
    %v575 = vsub.s32 1, %v574
    %v576 = vrot.slane %v493, %v575
    %v577 = vmul.f32 %v576, %v546
    %v578 = vmul.f32 %v576, %v548
    %v579 = vmul.f32 %v577, 1.442695
    %v580 = vpow.pop %v579
    %v581 = vmul.f32 %v578, 1.442695
    %v582 = vpow.pop %v581
    %v583 = vlaneseq
    %v584 = vshrl.u32 %v583, 7
    %v585 = vsub.s32 1, %v584
    %v586 = vrot.slane %v538, %v585
    %587 = vset.pattern.permute.xlu0 1
    %588 = vperm.xlu0 %587, %v510
    %v589 = vpop.permute.xlu0 %588
    %591 = vset.pattern.permute.xlu0 1
    %592 = vperm.xlu0 %591, %v511
    %v593 = vpop.permute.xlu0 %592
    %v595 = vmul.f32 %v586, %v589
    %v596 = vmul.f32 %v586, %v593
    %v597 = vlaneseq
    %v598 = vshrl.u32 %v597, 7
    %v599 = vsub.s32 2, %v598
    %v600 = vrot.slane %v493, %v599
    %v601 = vmul.f32 %v600, %v546
    %v602 = vmul.f32 %v600, %v548
    %v603 = vmul.f32 %v601, 1.442695
    %v604 = vpow.pop %v603
    %v605 = vmul.f32 %v602, 1.442695
    %v606 = vpow.pop %v605
    %v607 = vlaneseq
    %v608 = vshrl.u32 %v607, 7
    %v609 = vsub.s32 2, %v608
    %v610 = vrot.slane %v538, %v609
    %611 = vset.pattern.permute.xlu0 2
    %612 = vperm.xlu0 %611, %v510
    %v613 = vpop.permute.xlu0 %612
    %615 = vset.pattern.permute.xlu0 2
    %616 = vperm.xlu0 %615, %v511
    %v617 = vpop.permute.xlu0 %616
    %v619 = vmul.f32 %v610, %v613
    %v620 = vmul.f32 %v610, %v617
    %v621 = vlaneseq
    %v622 = vshrl.u32 %v621, 7
    %v623 = vsub.s32 3, %v622
    %v624 = vrot.slane %v493, %v623
    %v625 = vmul.f32 %v624, %v546
    %v626 = vmul.f32 %v624, %v548
    %v627 = vmul.f32 %v625, 1.442695
    %v628 = vpow.pop %v627
    %v629 = vmul.f32 %v626, 1.442695
    %v630 = vpow.pop %v629
    %v631 = vlaneseq
    %v632 = vshrl.u32 %v631, 7
    %v633 = vsub.s32 3, %v632
    %v634 = vrot.slane %v538, %v633
    %635 = vset.pattern.permute.xlu0 3
    %636 = vperm.xlu0 %635, %v510
    %v637 = vpop.permute.xlu0 %636
    %639 = vset.pattern.permute.xlu0 3
    %640 = vperm.xlu0 %639, %v511
    %v641 = vpop.permute.xlu0 %640
    %v643 = vmul.f32 %v634, %v637
    %v644 = vmul.f32 %v634, %v641
    %v645 = vlaneseq
    %v646 = vshrl.u32 %v645, 7
    %v647 = vsub.s32 4, %v646
    %v648 = vrot.slane %v493, %v647
    %v649 = vmul.f32 %v648, %v546
    %v650 = vmul.f32 %v648, %v548
    %v651 = vmul.f32 %v649, 1.442695
    %v652 = vpow.pop %v651
    %v653 = vmul.f32 %v650, 1.442695
    %v654 = vpow.pop %v653
    %v655 = vlaneseq
    %v656 = vshrl.u32 %v655, 7
    %v657 = vsub.s32 4, %v656
    %v658 = vrot.slane %v538, %v657
    %659 = vset.pattern.permute.xlu0 4
    %660 = vperm.xlu0 %659, %v510
    %v661 = vpop.permute.xlu0 %660
    %663 = vset.pattern.permute.xlu0 4
    %664 = vperm.xlu0 %663, %v511
    %v665 = vpop.permute.xlu0 %664
    %v667 = vmul.f32 %v658, %v661
    %v668 = vmul.f32 %v658, %v665
    %v669 = vlaneseq
    %v670 = vshrl.u32 %v669, 7
    %v671 = vsub.s32 5, %v670
    %v672 = vrot.slane %v493, %v671
    %v673 = vmul.f32 %v672, %v546
    %v674 = vmul.f32 %v672, %v548
    %v675 = vmul.f32 %v673, 1.442695
    %v676 = vpow.pop %v675
    %v677 = vmul.f32 %v674, 1.442695
    %v678 = vpow.pop %v677
    %v679 = vlaneseq
    %v680 = vshrl.u32 %v679, 7
    %v681 = vsub.s32 5, %v680
    %v682 = vrot.slane %v538, %v681
    %683 = vset.pattern.permute.xlu0 5
    %684 = vperm.xlu0 %683, %v510
    %v685 = vpop.permute.xlu0 %684
    %687 = vset.pattern.permute.xlu0 5
    %688 = vperm.xlu0 %687, %v511
    %v689 = vpop.permute.xlu0 %688
    %v691 = vmul.f32 %v682, %v685
    %v692 = vmul.f32 %v682, %v689
    %v693 = vlaneseq
    %v694 = vshrl.u32 %v693, 7
    %v695 = vsub.s32 6, %v694
    %v696 = vrot.slane %v493, %v695
    %v697 = vmul.f32 %v696, %v546
    %v698 = vmul.f32 %v696, %v548
    %v699 = vmul.f32 %v697, 1.442695
    %v700 = vpow.pop %v699
    %v701 = vmul.f32 %v698, 1.442695
    %v702 = vpow.pop %v701
    %v703 = vlaneseq
    %v704 = vshrl.u32 %v703, 7
    %v705 = vsub.s32 6, %v704
    %v706 = vrot.slane %v538, %v705
    %707 = vset.pattern.permute.xlu0 6
    %708 = vperm.xlu0 %707, %v510
    %v709 = vpop.permute.xlu0 %708
    %711 = vset.pattern.permute.xlu0 6
    %712 = vperm.xlu0 %711, %v511
    %v713 = vpop.permute.xlu0 %712
    %v715 = vmul.f32 %v706, %v709
    %v716 = vmul.f32 %v706, %v713
    %v717 = vlaneseq
    %v718 = vshrl.u32 %v717, 7
    %v719 = vsub.s32 7, %v718
    %v720 = vrot.slane %v493, %v719
    %v721 = vmul.f32 %v720, %v546
    %v722 = vmul.f32 %v720, %v548
    %v723 = vmul.f32 %v721, 1.442695
    %v724 = vpow.pop %v723
    %v725 = vmul.f32 %v722, 1.442695
    %v726 = vpow.pop %v725
    %v727 = vlaneseq
    %v728 = vshrl.u32 %v727, 7
    %v729 = vsub.s32 7, %v728
    %v730 = vrot.slane %v538, %v729
    %731 = vset.pattern.permute.xlu0 7
    %732 = vperm.xlu0 %731, %v510
    %v733 = vpop.permute.xlu0 %732
    %735 = vset.pattern.permute.xlu0 7
    %736 = vperm.xlu0 %735, %v511
    %v737 = vpop.permute.xlu0 %736
    %v739 = vmul.f32 %v730, %v733
    %v740 = vmul.f32 %v730, %v737
    %v741 = vmul.f32 %v554, 0.0
    %v742 = vmul.f32 %v556, 0.0
    %v743 = vadd.f32 %v741, %v571
    %v744 = vadd.f32 %v742, %v572
    %v745 = vmul.f32 %v580, %v743
    %v746 = vmul.f32 %v582, %v744
    %v747 = vadd.f32 %v745, %v595
    %v748 = vadd.f32 %v746, %v596
    %v749 = vmul.f32 %v604, %v747
    %v750 = vmul.f32 %v606, %v748
    %v751 = vadd.f32 %v749, %v619
    %v752 = vadd.f32 %v750, %v620
    %v753 = vmul.f32 %v628, %v751
    %v754 = vmul.f32 %v630, %v752
    %v755 = vadd.f32 %v753, %v643
    %v756 = vadd.f32 %v754, %v644
    %v757 = vmul.f32 %v652, %v755
    %v758 = vmul.f32 %v654, %v756
    %v759 = vadd.f32 %v757, %v667
    %v760 = vadd.f32 %v758, %v668
    %v761 = vmul.f32 %v676, %v759
    %v762 = vmul.f32 %v678, %v760
    %v763 = vadd.f32 %v761, %v691
    %v764 = vadd.f32 %v762, %v692
    %v765 = vmul.f32 %v700, %v763
    %v766 = vmul.f32 %v702, %v764
    %v767 = vadd.f32 %v765, %v715
    %v768 = vadd.f32 %v766, %v716
    %v769 = vmul.f32 %v724, %v767
    %v770 = vmul.f32 %v726, %v768
    %v771 = vadd.f32 %v769, %v739
    %v772 = vadd.f32 %v770, %v740
    %774 = vset.pattern.permute.xlu0 0
    %775 = vperm.xlu0 %774, %v512
    %v776 = vpop.permute.xlu0 %775
    %779 = vset.pattern.permute.xlu0 0
    %780 = vperm.xlu0 %779, %v513
    %v781 = vpop.permute.xlu0 %780
    %v783 = vmul.f32 %v743, %v776
    %v784 = vmul.f32 %v744, %v781
    %vm785 = vcmask 1048064
    %v786 = vsel %vm785, %v783, 0.0
    %v787 = vsel %vm785, %v784, 0.0
    %v788 = vadd.f32 %v786, %v787
    %v789 = vrot.slane %v788, 4
    %v790 = vadd.f32 %v788, %v789
    %v791 = vrot.slane %v790, 2
    %v792 = vadd.f32 %v790, %v791
    %v793 = vrot.slane %v792, 1
    %v794 = vadd.f32 %v792, %v793
    %vm795 = vcmp.eq.s32.totalorder %v162, 0
    %v796 = vsel %vm795, 1, 0
    %vm797 = vcmp.eq.s32.totalorder %v796, 1
    %v798 = vsel %vm797, %v794, 0.0
    %799 = vset.pattern.permute.xlu0 1
    %800 = vperm.xlu0 %799, %v512
    %v801 = vpop.permute.xlu0 %800
    %803 = vset.pattern.permute.xlu0 1
    %804 = vperm.xlu0 %803, %v513
    %v805 = vpop.permute.xlu0 %804
    %v807 = vmul.f32 %v747, %v801
    %v808 = vmul.f32 %v748, %v805
    %v809 = vsel %vm785, %v807, 0.0
    %v810 = vsel %vm785, %v808, 0.0
    %v811 = vadd.f32 %v809, %v810
    %v812 = vrot.slane %v811, 4
    %v813 = vadd.f32 %v811, %v812
    %v814 = vrot.slane %v813, 2
    %v815 = vadd.f32 %v813, %v814
    %v816 = vrot.slane %v815, 1
    %v817 = vadd.f32 %v815, %v816
    %vm818 = vcmp.eq.s32.totalorder %v162, 1
    %v819 = vsel %vm818, 1, 0
    %vm820 = vcmp.eq.s32.totalorder %v819, 1
    %v821 = vsel %vm820, %v817, %v798
    %822 = vset.pattern.permute.xlu0 2
    %823 = vperm.xlu0 %822, %v512
    %v824 = vpop.permute.xlu0 %823
    %826 = vset.pattern.permute.xlu0 2
    %827 = vperm.xlu0 %826, %v513
    %v828 = vpop.permute.xlu0 %827
    %v830 = vmul.f32 %v751, %v824
    %v831 = vmul.f32 %v752, %v828
    %v832 = vsel %vm785, %v830, 0.0
    %v833 = vsel %vm785, %v831, 0.0
    %v834 = vadd.f32 %v832, %v833
    %v835 = vrot.slane %v834, 4
    %v836 = vadd.f32 %v834, %v835
    %v837 = vrot.slane %v836, 2
    %v838 = vadd.f32 %v836, %v837
    %v839 = vrot.slane %v838, 1
    %v840 = vadd.f32 %v838, %v839
    %vm841 = vcmp.eq.s32.totalorder %v162, 2
    %v842 = vsel %vm841, 1, 0
    %vm843 = vcmp.eq.s32.totalorder %v842, 1
    %v844 = vsel %vm843, %v840, %v821
    %845 = vset.pattern.permute.xlu0 3
    %846 = vperm.xlu0 %845, %v512
    %v847 = vpop.permute.xlu0 %846
    %849 = vset.pattern.permute.xlu0 3
    %850 = vperm.xlu0 %849, %v513
    %v851 = vpop.permute.xlu0 %850
    %v853 = vmul.f32 %v755, %v847
    %v854 = vmul.f32 %v756, %v851
    %v855 = vsel %vm785, %v853, 0.0
    %v856 = vsel %vm785, %v854, 0.0
    %v857 = vadd.f32 %v855, %v856
    %v858 = vrot.slane %v857, 4
    %v859 = vadd.f32 %v857, %v858
    %v860 = vrot.slane %v859, 2
    %v861 = vadd.f32 %v859, %v860
    %v862 = vrot.slane %v861, 1
    %v863 = vadd.f32 %v861, %v862
    %vm864 = vcmp.eq.s32.totalorder %v162, 3
    %v865 = vsel %vm864, 1, 0
    %vm866 = vcmp.eq.s32.totalorder %v865, 1
    %v867 = vsel %vm866, %v863, %v844
    %868 = vset.pattern.permute.xlu0 4
    %869 = vperm.xlu0 %868, %v512
    %v870 = vpop.permute.xlu0 %869
    %872 = vset.pattern.permute.xlu0 4
    %873 = vperm.xlu0 %872, %v513
    %v874 = vpop.permute.xlu0 %873
    %v876 = vmul.f32 %v759, %v870
    %v877 = vmul.f32 %v760, %v874
    %v878 = vsel %vm785, %v876, 0.0
    %v879 = vsel %vm785, %v877, 0.0
    %v880 = vadd.f32 %v878, %v879
    %v881 = vrot.slane %v880, 4
    %v882 = vadd.f32 %v880, %v881
    %v883 = vrot.slane %v882, 2
    %v884 = vadd.f32 %v882, %v883
    %v885 = vrot.slane %v884, 1
    %v886 = vadd.f32 %v884, %v885
    %vm887 = vcmp.eq.s32.totalorder %v162, 4
    %v888 = vsel %vm887, 1, 0
    %vm889 = vcmp.eq.s32.totalorder %v888, 1
    %v890 = vsel %vm889, %v886, %v867
    %891 = vset.pattern.permute.xlu0 5
    %892 = vperm.xlu0 %891, %v512
    %v893 = vpop.permute.xlu0 %892
    %895 = vset.pattern.permute.xlu0 5
    %896 = vperm.xlu0 %895, %v513
    %v897 = vpop.permute.xlu0 %896
    %v899 = vmul.f32 %v763, %v893
    %v900 = vmul.f32 %v764, %v897
    %v901 = vsel %vm785, %v899, 0.0
    %v902 = vsel %vm785, %v900, 0.0
    %v903 = vadd.f32 %v901, %v902
    %v904 = vrot.slane %v903, 4
    %v905 = vadd.f32 %v903, %v904
    %v906 = vrot.slane %v905, 2
    %v907 = vadd.f32 %v905, %v906
    %v908 = vrot.slane %v907, 1
    %v909 = vadd.f32 %v907, %v908
    %vm910 = vcmp.eq.s32.totalorder %v162, 5
    %v911 = vsel %vm910, 1, 0
    %vm912 = vcmp.eq.s32.totalorder %v911, 1
    %v913 = vsel %vm912, %v909, %v890
    %914 = vset.pattern.permute.xlu0 6
    %915 = vperm.xlu0 %914, %v512
    %v916 = vpop.permute.xlu0 %915
    %918 = vset.pattern.permute.xlu0 6
    %919 = vperm.xlu0 %918, %v513
    %v920 = vpop.permute.xlu0 %919
    %v922 = vmul.f32 %v767, %v916
    %v923 = vmul.f32 %v768, %v920
    %v924 = vsel %vm785, %v922, 0.0
    %v925 = vsel %vm785, %v923, 0.0
    %v926 = vadd.f32 %v924, %v925
    %v927 = vrot.slane %v926, 4
    %v928 = vadd.f32 %v926, %v927
    %v929 = vrot.slane %v928, 2
    %v930 = vadd.f32 %v928, %v929
    %v931 = vrot.slane %v930, 1
    %v932 = vadd.f32 %v930, %v931
    %vm933 = vcmp.eq.s32.totalorder %v162, 6
    %v934 = vsel %vm933, 1, 0
    %vm935 = vcmp.eq.s32.totalorder %v934, 1
    %v936 = vsel %vm935, %v932, %v913
    %937 = vset.pattern.permute.xlu0 7
    %938 = vperm.xlu0 %937, %v512
    %v939 = vpop.permute.xlu0 %938
    %941 = vset.pattern.permute.xlu0 7
    %942 = vperm.xlu0 %941, %v513
    %v943 = vpop.permute.xlu0 %942
    %v945 = vmul.f32 %v771, %v939
    %v946 = vmul.f32 %v772, %v943
    %v947 = vsel %vm785, %v945, 0.0
    %v948 = vsel %vm785, %v946, 0.0
    %v949 = vadd.f32 %v947, %v948
    %v950 = vrot.slane %v949, 4
    %v951 = vadd.f32 %v949, %v950
    %v952 = vrot.slane %v951, 2
    %v953 = vadd.f32 %v951, %v952
    %v954 = vrot.slane %v953, 1
    %v955 = vadd.f32 %v953, %v954
    %vm956 = vcmp.eq.s32.totalorder %v162, 7
    %v957 = vsel %vm956, 1, 0
    %vm958 = vcmp.eq.s32.totalorder %v957, 1
    %v959 = vsel %vm958, %v955, %v936
    %v960 = vld [vmem:[%s9] sm:$0x1]
    %v962 = vlaneseq
    %v963 = vshrl.u32 %v962, 7
    %v964 = vsub.s32 0, %v963
    %v965 = vrot.slane %v960, %v964
    %v967 = vmul.f32 %v965, %v386
    %969 = vrot.lane.b32.xlu0 %v967, 64
    %v970 = vpop.permute.xlu0 %969
    %v972 = vadd.f32 %v959, %v970
    %v973 = vmul.f32 %v972, %v534
    %v974 = vld [vmem:[%s10] sm:$0xff]
    %v975 = vld [vmem:[%s10 + $0x8] sm:$0xff]
    %v976 = vld [vmem:[%s10 + $0x10] sm:$0xff]
    %v977 = vld [vmem:[%s10 + $0x18] sm:$0xff]
    %v978 = vld [vmem:[%s10 + $0x20] sm:$0xff]
    %v979 = vld [vmem:[%s10 + $0x28] sm:$0xff]
    %v980 = vld [vmem:[%s10 + $0x30] sm:$0xff]
    %v981 = vld [vmem:[%s10 + $0x38] sm:$0xff]
    %983 = vrot.lane.b32.xlu0 %v973, 64
    %v984 = vpop.permute.xlu0 %983
    %v985 = vsel %vm395, %v984, 0
    %987 = vmatprep.subr.mxu0 0.0
    %988 = vmatpush1.msra.mxu0 %v974
    %989 = vmatprep.subr.mxu0 0.0
    %990 = vmatpush1.msra.mxu0 %v975
    %991 = vmatprep.subr.mxu0 0.0
    %992 = vmatpush1.msra.mxu0 %v976
    %993 = vmatprep.subr.mxu0 0.0
    %994 = vmatpush1.msra.mxu0 %v977
    %995 = vmatprep.subr.mxu0 0.0
    %996 = vmatpush1.msra.mxu0 %v978
    %997 = vmatprep.subr.mxu0 0.0
    %998 = vmatpush1.msra.mxu0 %v979
    %999 = vmatprep.subr.mxu0 0.0
    %1000 = vmatpush1.msra.mxu0 %v980
    %1001 = vmatprep.subr.mxu0 0.0
    %1002 = vmatpush1.msra.mxu0 %v981
    %1003 = vmatprep.subr.mxu0 0.0
    %1004 = vmatpush1.msra.mxu0 0.0
    %1005 = vmatprep.subr.mxu0 0.0
    %1006 = vmatpush1.msra.mxu0 0.0
    %1007 = vmatprep.subr.mxu0 0.0
    %1008 = vmatpush1.msra.mxu0 0.0
    %1009 = vmatprep.subr.mxu0 0.0
    %1010 = vmatpush1.msra.mxu0 0.0
    %1011 = vmatprep.subr.mxu0 0.0
    %1012 = vmatpush1.msra.mxu0 0.0
    %1013 = vmatprep.subr.mxu0 0.0
    %1014 = vmatpush1.msra.mxu0 0.0
    %1015 = vmatprep.subr.mxu0 0.0
    %1016 = vmatpush1.msra.mxu0 0.0
    %1017 = vmatprep.subr.mxu0 0.0
    %1018 = vmatpush1.msra.mxu0 0.0
    %1019 = vmatprep.subr.mxu0 0.0
    %1020 = vmatpush1.msra.mxu0 0.0
    %1021 = vmatprep.subr.mxu0 0.0
    %1022 = vmatpush1.msra.mxu0 0.0
    %1023 = vmatprep.subr.mxu0 0.0
    %1024 = vmatpush1.msra.mxu0 0.0
    %1025 = vmatprep.subr.mxu0 0.0
    %1026 = vmatpush1.msra.mxu0 0.0
    %1027 = vmatprep.subr.mxu0 0.0
    %1028 = vmatpush1.msra.mxu0 0.0
    %1029 = vmatprep.subr.mxu0 0.0
    %1030 = vmatpush1.msra.mxu0 0.0
    %1031 = vmatprep.subr.mxu0 0.0
    %1032 = vmatpush1.msra.mxu0 0.0
    %1033 = vmatprep.subr.mxu0 0.0
    %1034 = vmatpush1.msra.mxu0 0.0
    %1035 = vmatprep.subr.mxu0 0.0
    %1036 = vmatpush1.msra.mxu0 0.0
    %1037 = vmatprep.subr.mxu0 0.0
    %1038 = vmatpush1.msra.mxu0 0.0
    %1039 = vmatprep.subr.mxu0 0.0
    %1040 = vmatpush1.msra.mxu0 0.0
    %1041 = vmatprep.subr.mxu0 0.0
    %1042 = vmatpush1.msra.mxu0 0.0
    %1043 = vmatprep.subr.mxu0 0.0
    %1044 = vmatpush1.msra.mxu0 0.0
    %1045 = vmatprep.subr.mxu0 0.0
    %1046 = vmatpush1.msra.mxu0 0.0
    %1047 = vmatprep.subr.mxu0 0.0
    %1048 = vmatpush1.msra.mxu0 0.0
    %1049 = vmatprep.subr.mxu0 0.0
    %1050 = vmatpush1.msra.mxu0 0.0
    %1051 = vmatprep.mubr.f32.mxu0 0.0
    %1052 = vmatmul.mubr.f32.gmra.mrb[0].mxu0 %v985
    %v1053 = vpop.f32.mrb[0].mxu0
    %v1054 = vadd.f32 %v154, %v1053
    %v1055 = vpop.f32.mrb[0].mxu0
    %1056 = vdwg.mxu0
    %v1057 = vmul.f32 %v1054, %v1054
    %v1058 = vsel %vm164, %v1057, 0.0
    %1059 = vadd.xlane.f32.xlu0 %v1058
    %v1060 = vpop.xlane.xlu0 %1059
    %v1061 = vmul.f32 %v1060, %v168
    %v1062 = vadd.f32 %v1061, 1e-05
    %v1063 = vrsqrt.pop %v1062
    %v1064 = vmul.f32 %v1054, %v1063
    %s1065 = scalar_lea.vmem %s2, 32
    %v1066 = vld [vmem:[%s1065] sm:$0xff]
    %v1067 = vld [vmem:[%s1065 + $0x8] sm:$0xff]
    %v1068 = vld [vmem:[%s1065 + $0x10] sm:$0xff]
    %v1069 = vld [vmem:[%s1065 + $0x18] sm:$0xff]
    %v1071 = vsel %vm164, %v1064, 0
    %1073 = vmatprep.subr.mxu0 0.0
    %1074 = vmatpush1.msra.mxu0 %v1066
    %1075 = vmatprep.subr.mxu0 0.0
    %1076 = vmatpush1.msra.mxu0 %v1067
    %1077 = vmatprep.subr.mxu0 0.0
    %1078 = vmatpush1.msra.mxu0 %v1068
    %1079 = vmatprep.subr.mxu0 0.0
    %1080 = vmatpush1.msra.mxu0 %v1069
    %1081 = vmatprep.subr.mxu0 0.0
    %1082 = vmatpush1.msra.mxu0 0.0
    %1083 = vmatprep.subr.mxu0 0.0
    %1084 = vmatpush1.msra.mxu0 0.0
    %1085 = vmatprep.subr.mxu0 0.0
    %1086 = vmatpush1.msra.mxu0 0.0
    %1087 = vmatprep.subr.mxu0 0.0
    %1088 = vmatpush1.msra.mxu0 0.0
    %1089 = vmatprep.subr.mxu0 0.0
    %1090 = vmatpush1.msra.mxu0 0.0
    %1091 = vmatprep.subr.mxu0 0.0
    %1092 = vmatpush1.msra.mxu0 0.0
    %1093 = vmatprep.subr.mxu0 0.0
    %1094 = vmatpush1.msra.mxu0 0.0
    %1095 = vmatprep.subr.mxu0 0.0
    %1096 = vmatpush1.msra.mxu0 0.0
    %1097 = vmatprep.subr.mxu0 0.0
    %1098 = vmatpush1.msra.mxu0 0.0
    %1099 = vmatprep.subr.mxu0 0.0
    %1100 = vmatpush1.msra.mxu0 0.0
    %1101 = vmatprep.subr.mxu0 0.0
    %1102 = vmatpush1.msra.mxu0 0.0
    %1103 = vmatprep.subr.mxu0 0.0
    %1104 = vmatpush1.msra.mxu0 0.0
    %1105 = vmatprep.subr.mxu0 0.0
    %1106 = vmatpush1.msra.mxu0 0.0
    %1107 = vmatprep.subr.mxu0 0.0
    %1108 = vmatpush1.msra.mxu0 0.0
    %1109 = vmatprep.subr.mxu0 0.0
    %1110 = vmatpush1.msra.mxu0 0.0
    %1111 = vmatprep.subr.mxu0 0.0
    %1112 = vmatpush1.msra.mxu0 0.0
    %1113 = vmatprep.subr.mxu0 0.0
    %1114 = vmatpush1.msra.mxu0 0.0
    %1115 = vmatprep.subr.mxu0 0.0
    %1116 = vmatpush1.msra.mxu0 0.0
    %1117 = vmatprep.subr.mxu0 0.0
    %1118 = vmatpush1.msra.mxu0 0.0
    %1119 = vmatprep.subr.mxu0 0.0
    %1120 = vmatpush1.msra.mxu0 0.0
    %1121 = vmatprep.subr.mxu0 0.0
    %1122 = vmatpush1.msra.mxu0 0.0
    %1123 = vmatprep.subr.mxu0 0.0
    %1124 = vmatpush1.msra.mxu0 0.0
    %1125 = vmatprep.subr.mxu0 0.0
    %1126 = vmatpush1.msra.mxu0 0.0
    %1127 = vmatprep.subr.mxu0 0.0
    %1128 = vmatpush1.msra.mxu0 0.0
    %1129 = vmatprep.subr.mxu0 0.0
    %1130 = vmatpush1.msra.mxu0 0.0
    %1131 = vmatprep.subr.mxu0 0.0
    %1132 = vmatpush1.msra.mxu0 0.0
    %1133 = vmatprep.subr.mxu0 0.0
    %1134 = vmatpush1.msra.mxu0 0.0
    %1135 = vmatprep.subr.mxu0 0.0
    %1136 = vmatpush1.msra.mxu0 0.0
    %1137 = vmatprep.mubr.f32.mxu0 0.0
    %1138 = vmatmul.mubr.f32.gmra.mrb[0].mxu0 %v1071
    %v1139 = vpop.f32.mrb[0].mxu0
    %v1140 = vadd.f32 0.0, %v1139
    %v1141 = vpop.f32.mrb[0].mxu0
    %1142 = vdwg.mxu0
    %1143 = vmatprep.subr.mxu0 0.0
    %1144 = vmatpush1.msra.mxu0 %v1140
    %1145 = vmatprep.subr.mxu0 0.0
    %1146 = vmatpush1.msra.mxu0 0.0
    %1147 = vmatprep.subr.mxu0 0.0
    %1148 = vmatpush1.msra.mxu0 0.0
    %1149 = vmatprep.subr.mxu0 0.0
    %1150 = vmatpush1.msra.mxu0 0.0
    %1151 = vmatprep.subr.mxu0 0.0
    %1152 = vmatpush1.msra.mxu0 0.0
    %1153 = vmatprep.subr.mxu0 0.0
    %1154 = vmatpush1.msra.mxu0 0.0
    %1155 = vmatprep.subr.mxu0 0.0
    %1156 = vmatpush1.msra.mxu0 0.0
    %1157 = vmatprep.subr.mxu0 0.0
    %1158 = vmatpush1.msra.mxu0 0.0
    %1159 = vmatprep.subr.mxu0 0.0
    %1160 = vmatpush1.msra.mxu0 0.0
    %1161 = vmatprep.subr.mxu0 0.0
    %1162 = vmatpush1.msra.mxu0 0.0
    %1163 = vmatprep.subr.mxu0 0.0
    %1164 = vmatpush1.msra.mxu0 0.0
    %1165 = vmatprep.subr.mxu0 0.0
    %1166 = vmatpush1.msra.mxu0 0.0
    %1167 = vmatprep.subr.mxu0 0.0
    %1168 = vmatpush1.msra.mxu0 0.0
    %1169 = vmatprep.subr.mxu0 0.0
    %1170 = vmatpush1.msra.mxu0 0.0
    %1171 = vmatprep.subr.mxu0 0.0
    %1172 = vmatpush1.msra.mxu0 0.0
    %1173 = vmatprep.subr.mxu0 0.0
    %1174 = vmatpush1.msra.mxu0 0.0
    %1175 = vmatprep.subr.mxu0 0.0
    %1176 = vmatpush1.msra.mxu0 0.0
    %1177 = vmatprep.subr.mxu0 0.0
    %1178 = vmatpush1.msra.mxu0 0.0
    %1179 = vmatprep.subr.mxu0 0.0
    %1180 = vmatpush1.msra.mxu0 0.0
    %1181 = vmatprep.subr.mxu0 0.0
    %1182 = vmatpush1.msra.mxu0 0.0
    %1183 = vmatprep.subr.mxu0 0.0
    %1184 = vmatpush1.msra.mxu0 0.0
    %1185 = vmatprep.subr.mxu0 0.0
    %1186 = vmatpush1.msra.mxu0 0.0
    %1187 = vmatprep.subr.mxu0 0.0
    %1188 = vmatpush1.msra.mxu0 0.0
    %1189 = vmatprep.subr.mxu0 0.0
    %1190 = vmatpush1.msra.mxu0 0.0
    %1191 = vmatprep.subr.mxu0 0.0
    %1192 = vmatpush1.msra.mxu0 0.0
    %1193 = vmatprep.subr.mxu0 0.0
    %1194 = vmatpush1.msra.mxu0 0.0
    %1195 = vmatprep.subr.mxu0 0.0
    %1196 = vmatpush1.msra.mxu0 0.0
    %1197 = vmatprep.subr.mxu0 0.0
    %1198 = vmatpush1.msra.mxu0 0.0
    %1199 = vmatprep.subr.mxu0 0.0
    %1200 = vmatpush1.msra.mxu0 0.0
    %1201 = vmatprep.subr.mxu0 0.0
    %1202 = vmatpush1.msra.mxu0 0.0
    %1203 = vmatprep.subr.mxu0 0.0
    %1204 = vmatpush1.msra.mxu0 0.0
    %1205 = vmatprep.subr.mxu0 0.0
    %1206 = vmatpush1.msra.mxu0 0.0
    %1207 = vmatprep.mubr.f32.mxu0 0.0
    %1208 = vmatmul.mubr.f32.gmra.mrb[0].mxu0 %v252
    %v1209 = vpop.f32.mrb[0].mxu0
    %v1210 = vadd.f32 0.0, %v1209
    %v1211 = vpop.f32.mrb[0].mxu0
    %1212 = vmatprep.mubr.f32.mxu0 0.0
    %1213 = vmatmul.mubr.f32.gmra.mrb[0].mxu0 %v255
    %v1214 = vpop.f32.mrb[0].mxu0
    %v1215 = vadd.f32 0.0, %v1214
    %v1216 = vpop.f32.mrb[0].mxu0
    %1217 = vmatprep.mubr.f32.mxu0 0.0
    %1218 = vmatmul.mubr.f32.gmra.mrb[0].mxu0 %v258
    %v1219 = vpop.f32.mrb[0].mxu0
    %v1220 = vadd.f32 0.0, %v1219
    %v1221 = vpop.f32.mrb[0].mxu0
    %1222 = vmatprep.mubr.f32.mxu0 0.0
    %1223 = vmatmul.mubr.f32.gmra.mrb[0].mxu0 %v261
    %v1224 = vpop.f32.mrb[0].mxu0
    %v1225 = vadd.f32 0.0, %v1224
    %v1226 = vpop.f32.mrb[0].mxu0
    %1227 = vdwg.mxu0
    %s1228 = scalar_lea.vmem %s4, 4
    %v1229 = vld [vmem:[%s1228] sm:$0xf]
    %s1230 = scalar_lea.vmem %s5, 1
    %v1231 = vld [vmem:[%s1230] sm:$0x1]
    %v1232 = vlaneseq
    %v1233 = vshrl.u32 %v1232, 7
    %v1234 = vsub.s32 0, %v1233
    %v1235 = vrot.slane %v1229, %v1234
    %v1236 = vmul.f32 %v1210, %v1235
    %v1238 = vlaneseq
    %v1239 = vshrl.u32 %v1238, 7
    %v1240 = vsub.s32 0, %v1239
    %v1241 = vrot.slane %v1231, %v1240
    %v1243 = vadd.f32 %v1241, %v1236
    %v1244 = vlaneseq
    %v1245 = vshrl.u32 %v1244, 7
    %v1246 = vsub.s32 1, %v1245
    %v1247 = vrot.slane %v1229, %v1246
    %v1248 = vmul.f32 %v1215, %v1247
    %v1249 = vadd.f32 %v1243, %v1248
    %v1250 = vlaneseq
    %v1251 = vshrl.u32 %v1250, 7
    %v1252 = vsub.s32 2, %v1251
    %v1253 = vrot.slane %v1229, %v1252
    %v1254 = vmul.f32 %v1220, %v1253
    %v1255 = vadd.f32 %v1249, %v1254
    %v1256 = vlaneseq
    %v1257 = vshrl.u32 %v1256, 7
    %v1258 = vsub.s32 3, %v1257
    %v1259 = vrot.slane %v1229, %v1258
    %v1260 = vmul.f32 %v1225, %v1259
    %v1261 = vadd.f32 %v1255, %v1260
    %v1262 = vsub.f32 0.0, %v1261
    %v1263 = vmul.f32 %v1262, 1.442695
    %v1264 = vpow.pop %v1263
    %v1265 = vadd.f32 %v1264, 1.0
    %v1266 = vrcp.pop %v1265
    %v1267 = vmul.f32 1.0, %v1266
    %v1268 = vmul.f32 %v1261, %v1267
    %s1269 = scalar_lea.vmem %s6, 64
    %v1270 = vld [vmem:[%s1269] sm:$0xff]
    %v1271 = vld [vmem:[%s1269 + $0x8] sm:$0xff]
    %v1272 = vld [vmem:[%s1269 + $0x10] sm:$0xff]
    %v1273 = vld [vmem:[%s1269 + $0x18] sm:$0xff]
    %v1274 = vld [vmem:[%s1269 + $0x20] sm:$0xff]
    %v1275 = vld [vmem:[%s1269 + $0x28] sm:$0xff]
    %v1276 = vld [vmem:[%s1269 + $0x30] sm:$0xff]
    %v1277 = vld [vmem:[%s1269 + $0x38] sm:$0xff]
    %v1279 = vsel %vm395, %v1268, 0
    %1281 = vmatprep.subr.mxu0 0.0
    %1282 = vmatpush1.msra.mxu0 %v1270
    %1283 = vmatprep.subr.mxu0 0.0
    %1284 = vmatpush1.msra.mxu0 %v1271
    %1285 = vmatprep.subr.mxu0 0.0
    %1286 = vmatpush1.msra.mxu0 %v1272
    %1287 = vmatprep.subr.mxu0 0.0
    %1288 = vmatpush1.msra.mxu0 %v1273
    %1289 = vmatprep.subr.mxu0 0.0
    %1290 = vmatpush1.msra.mxu0 %v1274
    %1291 = vmatprep.subr.mxu0 0.0
    %1292 = vmatpush1.msra.mxu0 %v1275
    %1293 = vmatprep.subr.mxu0 0.0
    %1294 = vmatpush1.msra.mxu0 %v1276
    %1295 = vmatprep.subr.mxu0 0.0
    %1296 = vmatpush1.msra.mxu0 %v1277
    %1297 = vmatprep.subr.mxu0 0.0
    %1298 = vmatpush1.msra.mxu0 0.0
    %1299 = vmatprep.subr.mxu0 0.0
    %1300 = vmatpush1.msra.mxu0 0.0
    %1301 = vmatprep.subr.mxu0 0.0
    %1302 = vmatpush1.msra.mxu0 0.0
    %1303 = vmatprep.subr.mxu0 0.0
    %1304 = vmatpush1.msra.mxu0 0.0
    %1305 = vmatprep.subr.mxu0 0.0
    %1306 = vmatpush1.msra.mxu0 0.0
    %1307 = vmatprep.subr.mxu0 0.0
    %1308 = vmatpush1.msra.mxu0 0.0
    %1309 = vmatprep.subr.mxu0 0.0
    %1310 = vmatpush1.msra.mxu0 0.0
    %1311 = vmatprep.subr.mxu0 0.0
    %1312 = vmatpush1.msra.mxu0 0.0
    %1313 = vmatprep.subr.mxu0 0.0
    %1314 = vmatpush1.msra.mxu0 0.0
    %1315 = vmatprep.subr.mxu0 0.0
    %1316 = vmatpush1.msra.mxu0 0.0
    %1317 = vmatprep.subr.mxu0 0.0
    %1318 = vmatpush1.msra.mxu0 0.0
    %1319 = vmatprep.subr.mxu0 0.0
    %1320 = vmatpush1.msra.mxu0 0.0
    %1321 = vmatprep.subr.mxu0 0.0
    %1322 = vmatpush1.msra.mxu0 0.0
    %1323 = vmatprep.subr.mxu0 0.0
    %1324 = vmatpush1.msra.mxu0 0.0
    %1325 = vmatprep.subr.mxu0 0.0
    %1326 = vmatpush1.msra.mxu0 0.0
    %1327 = vmatprep.subr.mxu0 0.0
    %1328 = vmatpush1.msra.mxu0 0.0
    %1329 = vmatprep.subr.mxu0 0.0
    %1330 = vmatpush1.msra.mxu0 0.0
    %1331 = vmatprep.subr.mxu0 0.0
    %1332 = vmatpush1.msra.mxu0 0.0
    %1333 = vmatprep.subr.mxu0 0.0
    %1334 = vmatpush1.msra.mxu0 0.0
    %1335 = vmatprep.subr.mxu0 0.0
    %1336 = vmatpush1.msra.mxu0 0.0
    %1337 = vmatprep.subr.mxu0 0.0
    %1338 = vmatpush1.msra.mxu0 0.0
    %1339 = vmatprep.subr.mxu0 0.0
    %1340 = vmatpush1.msra.mxu0 0.0
    %1341 = vmatprep.subr.mxu0 0.0
    %1342 = vmatpush1.msra.mxu0 0.0
    %1343 = vmatprep.subr.mxu0 0.0
    %1344 = vmatpush1.msra.mxu0 0.0
    %1345 = vmatprep.mubr.f32.mxu0 0.0
    %1346 = vmatmul.mubr.f32.gmra.mrb[0].mxu0 %v1279
    %v1347 = vpop.f32.mrb[0].mxu0
    %v1348 = vadd.f32 0.0, %v1347
    %v1349 = vpop.f32.mrb[0].mxu0
    %1350 = vdwg.mxu0
    %s1351 = scalar_lea.vmem %s7, 1
    %v1352 = vld [vmem:[%s1351] sm:$0x1]
    %v1354 = vlaneseq
    %v1355 = vshrl.u32 %v1354, 7
    %v1356 = vsub.s32 0, %v1355
    %v1357 = vrot.slane %v1352, %v1356
    %1358 = vrot.lane.b32.xlu0 %v1357, 64
    %v1359 = vpop.permute.xlu0 %1358
    %v1361 = vadd.f32 %v1348, %v1359
    %v1362 = vmax.f32 %v1361, 0.0
    %v1363 = vand.u32 2147483647, %v1361
    %v1364 = vsub.f32 0.0, %v1363
    %v1365 = vmul.f32 %v1364, 1.442695
    %v1366 = vpow.pop %v1365
    %v1367 = vadd.f32 %v1366, 1.0
    %v1368 = vlog2.pop %v1367
    %v1369 = vmul.f32 %v1368, 0.6931472
    %v1370 = vmul.f32 -0.5, %v1366
    %v1371 = vadd.f32 %v1370, 1.0
    %v1372 = vmul.f32 %v1371, %v1366
    %v1373 = vand.u32 2147483647, %v1366
    %vm1374 = vcmp.lt.f32.partialorder %v1373, 0.0004427343
    %v1375 = vsel %vm1374, %v1372, %v1369
    %v1376 = vadd.f32 %v1362, %v1375
    %1377 = vxpose.xlu0.b32.start [1/16] %v1348, 128
    %1378 = vxpose.xlu0.b32.cont [2/16] 0.0, 128
    %1379 = vxpose.xlu0.b32.cont [3/16] 0.0, 128
    %1380 = vxpose.xlu0.b32.cont [4/16] 0.0, 128
    %1381 = vxpose.xlu0.b32.cont [5/16] 0.0, 128
    %1382 = vxpose.xlu0.b32.cont [6/16] 0.0, 128
    %1383 = vxpose.xlu0.b32.cont [7/16] 0.0, 128
    %1384 = vxpose.xlu0.b32.cont [8/16] 0.0, 128
    %1385 = vxpose.xlu0.b32.cont [9/16] 0.0, 128
    %1386 = vxpose.xlu0.b32.cont [10/16] 0.0, 128
    %1387 = vxpose.xlu0.b32.cont [11/16] 0.0, 128
    %1388 = vxpose.xlu0.b32.cont [12/16] 0.0, 128
    %1389 = vxpose.xlu0.b32.cont [13/16] 0.0, 128
    %1390 = vxpose.xlu0.b32.cont [14/16] 0.0, 128
    %1391 = vxpose.xlu0.b32.cont [15/16] 0.0, 128
    %1392 = vxpose.xlu0.b32.end [16/16] 0.0, 128
    %v1393 = vpop.trf.xlu0
    %v1394 = vpop.trf.xlu0
    %v1395 = vpop.trf.xlu0
    %v1396 = vpop.trf.xlu0
    %v1397 = vpop.trf.xlu0
    %v1398 = vpop.trf.xlu0
    %v1399 = vpop.trf.xlu0
    %v1400 = vpop.trf.xlu0
    %v1401 = vpop.trf.xlu0
    %v1402 = vpop.trf.xlu0
    %v1403 = vpop.trf.xlu0
    %v1404 = vpop.trf.xlu0
    %v1405 = vpop.trf.xlu0
    %v1406 = vpop.trf.xlu0
    %v1407 = vpop.trf.xlu0
    %v1408 = vpop.trf.xlu0
    %s1409 = scalar_lea.vmem %s8, 16
    %v1410 = vld [vmem:[%s1409] sm:$0xff]
    %v1411 = vld [vmem:[%s1409 + $0x8] sm:$0xff]
    %v1412 = vsub.f32 0.0, %v1140
    %v1413 = vmul.f32 %v1412, 1.442695
    %v1414 = vpow.pop %v1413
    %v1415 = vadd.f32 %v1414, 1.0
    %v1416 = vrcp.pop %v1415
    %v1417 = vmul.f32 1.0, %v1416
    %v1418 = vmul.f32 %v1140, %v1417
    %1419 = vrot.lane.b32.xlu0 %v1268, 64
    %v1420 = vpop.permute.xlu0 %1419
    %v1422 = vmul.f32 %v1376, %v1420
    %v1423 = vlaneseq
    %v1424 = vshrl.u32 %v1423, 7
    %v1425 = vsub.s32 0, %v1424
    %v1426 = vrot.slane %v1376, %v1425
    %1429 = vrot.lane.b32.xlu0 %v1410, 64
    %v1430 = vpop.permute.xlu0 %1429
    %1431 = vrot.lane.b32.xlu0 %v1411, 64
    %v1432 = vpop.permute.xlu0 %1431
    %v1435 = vmul.f32 %v1426, %v1430
    %v1436 = vmul.f32 %v1426, %v1432
    %v1437 = vmul.f32 %v1435, 1.442695
    %v1438 = vpow.pop %v1437
    %v1439 = vmul.f32 %v1436, 1.442695
    %v1440 = vpow.pop %v1439
    %v1441 = vlaneseq
    %v1442 = vshrl.u32 %v1441, 7
    %v1443 = vsub.s32 0, %v1442
    %v1444 = vrot.slane %v1422, %v1443
    %1446 = vset.pattern.permute.xlu0 0
    %1447 = vperm.xlu0 %1446, %v1393
    %v1448 = vpop.permute.xlu0 %1447
    %1451 = vset.pattern.permute.xlu0 0
    %1452 = vperm.xlu0 %1451, %v1394
    %v1453 = vpop.permute.xlu0 %1452
    %v1455 = vmul.f32 %v1444, %v1448
    %v1456 = vmul.f32 %v1444, %v1453
    %v1457 = vlaneseq
    %v1458 = vshrl.u32 %v1457, 7
    %v1459 = vsub.s32 1, %v1458
    %v1460 = vrot.slane %v1376, %v1459
    %v1461 = vmul.f32 %v1460, %v1430
    %v1462 = vmul.f32 %v1460, %v1432
    %v1463 = vmul.f32 %v1461, 1.442695
    %v1464 = vpow.pop %v1463
    %v1465 = vmul.f32 %v1462, 1.442695
    %v1466 = vpow.pop %v1465
    %v1467 = vlaneseq
    %v1468 = vshrl.u32 %v1467, 7
    %v1469 = vsub.s32 1, %v1468
    %v1470 = vrot.slane %v1422, %v1469
    %1471 = vset.pattern.permute.xlu0 1
    %1472 = vperm.xlu0 %1471, %v1393
    %v1473 = vpop.permute.xlu0 %1472
    %1475 = vset.pattern.permute.xlu0 1
    %1476 = vperm.xlu0 %1475, %v1394
    %v1477 = vpop.permute.xlu0 %1476
    %v1479 = vmul.f32 %v1470, %v1473
    %v1480 = vmul.f32 %v1470, %v1477
    %v1481 = vlaneseq
    %v1482 = vshrl.u32 %v1481, 7
    %v1483 = vsub.s32 2, %v1482
    %v1484 = vrot.slane %v1376, %v1483
    %v1485 = vmul.f32 %v1484, %v1430
    %v1486 = vmul.f32 %v1484, %v1432
    %v1487 = vmul.f32 %v1485, 1.442695
    %v1488 = vpow.pop %v1487
    %v1489 = vmul.f32 %v1486, 1.442695
    %v1490 = vpow.pop %v1489
    %v1491 = vlaneseq
    %v1492 = vshrl.u32 %v1491, 7
    %v1493 = vsub.s32 2, %v1492
    %v1494 = vrot.slane %v1422, %v1493
    %1495 = vset.pattern.permute.xlu0 2
    %1496 = vperm.xlu0 %1495, %v1393
    %v1497 = vpop.permute.xlu0 %1496
    %1499 = vset.pattern.permute.xlu0 2
    %1500 = vperm.xlu0 %1499, %v1394
    %v1501 = vpop.permute.xlu0 %1500
    %v1503 = vmul.f32 %v1494, %v1497
    %v1504 = vmul.f32 %v1494, %v1501
    %v1505 = vlaneseq
    %v1506 = vshrl.u32 %v1505, 7
    %v1507 = vsub.s32 3, %v1506
    %v1508 = vrot.slane %v1376, %v1507
    %v1509 = vmul.f32 %v1508, %v1430
    %v1510 = vmul.f32 %v1508, %v1432
    %v1511 = vmul.f32 %v1509, 1.442695
    %v1512 = vpow.pop %v1511
    %v1513 = vmul.f32 %v1510, 1.442695
    %v1514 = vpow.pop %v1513
    %v1515 = vlaneseq
    %v1516 = vshrl.u32 %v1515, 7
    %v1517 = vsub.s32 3, %v1516
    %v1518 = vrot.slane %v1422, %v1517
    %1519 = vset.pattern.permute.xlu0 3
    %1520 = vperm.xlu0 %1519, %v1393
    %v1521 = vpop.permute.xlu0 %1520
    %1523 = vset.pattern.permute.xlu0 3
    %1524 = vperm.xlu0 %1523, %v1394
    %v1525 = vpop.permute.xlu0 %1524
    %v1527 = vmul.f32 %v1518, %v1521
    %v1528 = vmul.f32 %v1518, %v1525
    %v1529 = vlaneseq
    %v1530 = vshrl.u32 %v1529, 7
    %v1531 = vsub.s32 4, %v1530
    %v1532 = vrot.slane %v1376, %v1531
    %v1533 = vmul.f32 %v1532, %v1430
    %v1534 = vmul.f32 %v1532, %v1432
    %v1535 = vmul.f32 %v1533, 1.442695
    %v1536 = vpow.pop %v1535
    %v1537 = vmul.f32 %v1534, 1.442695
    %v1538 = vpow.pop %v1537
    %v1539 = vlaneseq
    %v1540 = vshrl.u32 %v1539, 7
    %v1541 = vsub.s32 4, %v1540
    %v1542 = vrot.slane %v1422, %v1541
    %1543 = vset.pattern.permute.xlu0 4
    %1544 = vperm.xlu0 %1543, %v1393
    %v1545 = vpop.permute.xlu0 %1544
    %1547 = vset.pattern.permute.xlu0 4
    %1548 = vperm.xlu0 %1547, %v1394
    %v1549 = vpop.permute.xlu0 %1548
    %v1551 = vmul.f32 %v1542, %v1545
    %v1552 = vmul.f32 %v1542, %v1549
    %v1553 = vlaneseq
    %v1554 = vshrl.u32 %v1553, 7
    %v1555 = vsub.s32 5, %v1554
    %v1556 = vrot.slane %v1376, %v1555
    %v1557 = vmul.f32 %v1556, %v1430
    %v1558 = vmul.f32 %v1556, %v1432
    %v1559 = vmul.f32 %v1557, 1.442695
    %v1560 = vpow.pop %v1559
    %v1561 = vmul.f32 %v1558, 1.442695
    %v1562 = vpow.pop %v1561
    %v1563 = vlaneseq
    %v1564 = vshrl.u32 %v1563, 7
    %v1565 = vsub.s32 5, %v1564
    %v1566 = vrot.slane %v1422, %v1565
    %1567 = vset.pattern.permute.xlu0 5
    %1568 = vperm.xlu0 %1567, %v1393
    %v1569 = vpop.permute.xlu0 %1568
    %1571 = vset.pattern.permute.xlu0 5
    %1572 = vperm.xlu0 %1571, %v1394
    %v1573 = vpop.permute.xlu0 %1572
    %v1575 = vmul.f32 %v1566, %v1569
    %v1576 = vmul.f32 %v1566, %v1573
    %v1577 = vlaneseq
    %v1578 = vshrl.u32 %v1577, 7
    %v1579 = vsub.s32 6, %v1578
    %v1580 = vrot.slane %v1376, %v1579
    %v1581 = vmul.f32 %v1580, %v1430
    %v1582 = vmul.f32 %v1580, %v1432
    %v1583 = vmul.f32 %v1581, 1.442695
    %v1584 = vpow.pop %v1583
    %v1585 = vmul.f32 %v1582, 1.442695
    %v1586 = vpow.pop %v1585
    %v1587 = vlaneseq
    %v1588 = vshrl.u32 %v1587, 7
    %v1589 = vsub.s32 6, %v1588
    %v1590 = vrot.slane %v1422, %v1589
    %1591 = vset.pattern.permute.xlu0 6
    %1592 = vperm.xlu0 %1591, %v1393
    %v1593 = vpop.permute.xlu0 %1592
    %1595 = vset.pattern.permute.xlu0 6
    %1596 = vperm.xlu0 %1595, %v1394
    %v1597 = vpop.permute.xlu0 %1596
    %v1599 = vmul.f32 %v1590, %v1593
    %v1600 = vmul.f32 %v1590, %v1597
    %v1601 = vlaneseq
    %v1602 = vshrl.u32 %v1601, 7
    %v1603 = vsub.s32 7, %v1602
    %v1604 = vrot.slane %v1376, %v1603
    %v1605 = vmul.f32 %v1604, %v1430
    %v1606 = vmul.f32 %v1604, %v1432
    %v1607 = vmul.f32 %v1605, 1.442695
    %v1608 = vpow.pop %v1607
    %v1609 = vmul.f32 %v1606, 1.442695
    %v1610 = vpow.pop %v1609
    %v1611 = vlaneseq
    %v1612 = vshrl.u32 %v1611, 7
    %v1613 = vsub.s32 7, %v1612
    %v1614 = vrot.slane %v1422, %v1613
    %1615 = vset.pattern.permute.xlu0 7
    %1616 = vperm.xlu0 %1615, %v1393
    %v1617 = vpop.permute.xlu0 %1616
    %1619 = vset.pattern.permute.xlu0 7
    %1620 = vperm.xlu0 %1619, %v1394
    %v1621 = vpop.permute.xlu0 %1620
    %v1623 = vmul.f32 %v1614, %v1617
    %v1624 = vmul.f32 %v1614, %v1621
    %v1625 = vmul.f32 %v1438, 0.0
    %v1626 = vmul.f32 %v1440, 0.0
    %v1627 = vadd.f32 %v1625, %v1455
    %v1628 = vadd.f32 %v1626, %v1456
    %v1629 = vmul.f32 %v1464, %v1627
    %v1630 = vmul.f32 %v1466, %v1628
    %v1631 = vadd.f32 %v1629, %v1479
    %v1632 = vadd.f32 %v1630, %v1480
    %v1633 = vmul.f32 %v1488, %v1631
    %v1634 = vmul.f32 %v1490, %v1632
    %v1635 = vadd.f32 %v1633, %v1503
    %v1636 = vadd.f32 %v1634, %v1504
    %v1637 = vmul.f32 %v1512, %v1635
    %v1638 = vmul.f32 %v1514, %v1636
    %v1639 = vadd.f32 %v1637, %v1527
    %v1640 = vadd.f32 %v1638, %v1528
    %v1641 = vmul.f32 %v1536, %v1639
    %v1642 = vmul.f32 %v1538, %v1640
    %v1643 = vadd.f32 %v1641, %v1551
    %v1644 = vadd.f32 %v1642, %v1552
    %v1645 = vmul.f32 %v1560, %v1643
    %v1646 = vmul.f32 %v1562, %v1644
    %v1647 = vadd.f32 %v1645, %v1575
    %v1648 = vadd.f32 %v1646, %v1576
    %v1649 = vmul.f32 %v1584, %v1647
    %v1650 = vmul.f32 %v1586, %v1648
    %v1651 = vadd.f32 %v1649, %v1599
    %v1652 = vadd.f32 %v1650, %v1600
    %v1653 = vmul.f32 %v1608, %v1651
    %v1654 = vmul.f32 %v1610, %v1652
    %v1655 = vadd.f32 %v1653, %v1623
    %v1656 = vadd.f32 %v1654, %v1624
    %1658 = vset.pattern.permute.xlu0 0
    %1659 = vperm.xlu0 %1658, %v1395
    %v1660 = vpop.permute.xlu0 %1659
    %1663 = vset.pattern.permute.xlu0 0
    %1664 = vperm.xlu0 %1663, %v1396
    %v1665 = vpop.permute.xlu0 %1664
    %v1667 = vmul.f32 %v1627, %v1660
    %v1668 = vmul.f32 %v1628, %v1665
    %v1669 = vsel %vm785, %v1667, 0.0
    %v1670 = vsel %vm785, %v1668, 0.0
    %v1671 = vadd.f32 %v1669, %v1670
    %v1672 = vrot.slane %v1671, 4
    %v1673 = vadd.f32 %v1671, %v1672
    %v1674 = vrot.slane %v1673, 2
    %v1675 = vadd.f32 %v1673, %v1674
    %v1676 = vrot.slane %v1675, 1
    %v1677 = vadd.f32 %v1675, %v1676
    %v1678 = vsel %vm797, %v1677, 0.0
    %1679 = vset.pattern.permute.xlu0 1
    %1680 = vperm.xlu0 %1679, %v1395
    %v1681 = vpop.permute.xlu0 %1680
    %1683 = vset.pattern.permute.xlu0 1
    %1684 = vperm.xlu0 %1683, %v1396
    %v1685 = vpop.permute.xlu0 %1684
    %v1687 = vmul.f32 %v1631, %v1681
    %v1688 = vmul.f32 %v1632, %v1685
    %v1689 = vsel %vm785, %v1687, 0.0
    %v1690 = vsel %vm785, %v1688, 0.0
    %v1691 = vadd.f32 %v1689, %v1690
    %v1692 = vrot.slane %v1691, 4
    %v1693 = vadd.f32 %v1691, %v1692
    %v1694 = vrot.slane %v1693, 2
    %v1695 = vadd.f32 %v1693, %v1694
    %v1696 = vrot.slane %v1695, 1
    %v1697 = vadd.f32 %v1695, %v1696
    %v1698 = vsel %vm820, %v1697, %v1678
    %1699 = vset.pattern.permute.xlu0 2
    %1700 = vperm.xlu0 %1699, %v1395
    %v1701 = vpop.permute.xlu0 %1700
    %1703 = vset.pattern.permute.xlu0 2
    %1704 = vperm.xlu0 %1703, %v1396
    %v1705 = vpop.permute.xlu0 %1704
    %v1707 = vmul.f32 %v1635, %v1701
    %v1708 = vmul.f32 %v1636, %v1705
    %v1709 = vsel %vm785, %v1707, 0.0
    %v1710 = vsel %vm785, %v1708, 0.0
    %v1711 = vadd.f32 %v1709, %v1710
    %v1712 = vrot.slane %v1711, 4
    %v1713 = vadd.f32 %v1711, %v1712
    %v1714 = vrot.slane %v1713, 2
    %v1715 = vadd.f32 %v1713, %v1714
    %v1716 = vrot.slane %v1715, 1
    %v1717 = vadd.f32 %v1715, %v1716
    %v1718 = vsel %vm843, %v1717, %v1698
    %1719 = vset.pattern.permute.xlu0 3
    %1720 = vperm.xlu0 %1719, %v1395
    %v1721 = vpop.permute.xlu0 %1720
    %1723 = vset.pattern.permute.xlu0 3
    %1724 = vperm.xlu0 %1723, %v1396
    %v1725 = vpop.permute.xlu0 %1724
    %v1727 = vmul.f32 %v1639, %v1721
    %v1728 = vmul.f32 %v1640, %v1725
    %v1729 = vsel %vm785, %v1727, 0.0
    %v1730 = vsel %vm785, %v1728, 0.0
    %v1731 = vadd.f32 %v1729, %v1730
    %v1732 = vrot.slane %v1731, 4
    %v1733 = vadd.f32 %v1731, %v1732
    %v1734 = vrot.slane %v1733, 2
    %v1735 = vadd.f32 %v1733, %v1734
    %v1736 = vrot.slane %v1735, 1
    %v1737 = vadd.f32 %v1735, %v1736
    %v1738 = vsel %vm866, %v1737, %v1718
    %1739 = vset.pattern.permute.xlu0 4
    %1740 = vperm.xlu0 %1739, %v1395
    %v1741 = vpop.permute.xlu0 %1740
    %1743 = vset.pattern.permute.xlu0 4
    %1744 = vperm.xlu0 %1743, %v1396
    %v1745 = vpop.permute.xlu0 %1744
    %v1747 = vmul.f32 %v1643, %v1741
    %v1748 = vmul.f32 %v1644, %v1745
    %v1749 = vsel %vm785, %v1747, 0.0
    %v1750 = vsel %vm785, %v1748, 0.0
    %v1751 = vadd.f32 %v1749, %v1750
    %v1752 = vrot.slane %v1751, 4
    %v1753 = vadd.f32 %v1751, %v1752
    %v1754 = vrot.slane %v1753, 2
    %v1755 = vadd.f32 %v1753, %v1754
    %v1756 = vrot.slane %v1755, 1
    %v1757 = vadd.f32 %v1755, %v1756
    %v1758 = vsel %vm889, %v1757, %v1738
    %1759 = vset.pattern.permute.xlu0 5
    %1760 = vperm.xlu0 %1759, %v1395
    %v1761 = vpop.permute.xlu0 %1760
    %1763 = vset.pattern.permute.xlu0 5
    %1764 = vperm.xlu0 %1763, %v1396
    %v1765 = vpop.permute.xlu0 %1764
    %v1767 = vmul.f32 %v1647, %v1761
    %v1768 = vmul.f32 %v1648, %v1765
    %v1769 = vsel %vm785, %v1767, 0.0
    %v1770 = vsel %vm785, %v1768, 0.0
    %v1771 = vadd.f32 %v1769, %v1770
    %v1772 = vrot.slane %v1771, 4
    %v1773 = vadd.f32 %v1771, %v1772
    %v1774 = vrot.slane %v1773, 2
    %v1775 = vadd.f32 %v1773, %v1774
    %v1776 = vrot.slane %v1775, 1
    %v1777 = vadd.f32 %v1775, %v1776
    %v1778 = vsel %vm912, %v1777, %v1758
    %1779 = vset.pattern.permute.xlu0 6
    %1780 = vperm.xlu0 %1779, %v1395
    %v1781 = vpop.permute.xlu0 %1780
    %1783 = vset.pattern.permute.xlu0 6
    %1784 = vperm.xlu0 %1783, %v1396
    %v1785 = vpop.permute.xlu0 %1784
    %v1787 = vmul.f32 %v1651, %v1781
    %v1788 = vmul.f32 %v1652, %v1785
    %v1789 = vsel %vm785, %v1787, 0.0
    %v1790 = vsel %vm785, %v1788, 0.0
    %v1791 = vadd.f32 %v1789, %v1790
    %v1792 = vrot.slane %v1791, 4
    %v1793 = vadd.f32 %v1791, %v1792
    %v1794 = vrot.slane %v1793, 2
    %v1795 = vadd.f32 %v1793, %v1794
    %v1796 = vrot.slane %v1795, 1
    %v1797 = vadd.f32 %v1795, %v1796
    %v1798 = vsel %vm935, %v1797, %v1778
    %1799 = vset.pattern.permute.xlu0 7
    %1800 = vperm.xlu0 %1799, %v1395
    %v1801 = vpop.permute.xlu0 %1800
    %1803 = vset.pattern.permute.xlu0 7
    %1804 = vperm.xlu0 %1803, %v1396
    %v1805 = vpop.permute.xlu0 %1804
    %v1807 = vmul.f32 %v1655, %v1801
    %v1808 = vmul.f32 %v1656, %v1805
    %v1809 = vsel %vm785, %v1807, 0.0
    %v1810 = vsel %vm785, %v1808, 0.0
    %v1811 = vadd.f32 %v1809, %v1810
    %v1812 = vrot.slane %v1811, 4
    %v1813 = vadd.f32 %v1811, %v1812
    %v1814 = vrot.slane %v1813, 2
    %v1815 = vadd.f32 %v1813, %v1814
    %v1816 = vrot.slane %v1815, 1
    %v1817 = vadd.f32 %v1815, %v1816
    %v1818 = vsel %vm958, %v1817, %v1798
    %s1819 = scalar_lea.vmem %s9, 1
    %v1820 = vld [vmem:[%s1819] sm:$0x1]
    %v1822 = vlaneseq
    %v1823 = vshrl.u32 %v1822, 7
    %v1824 = vsub.s32 0, %v1823
    %v1825 = vrot.slane %v1820, %v1824
    %v1827 = vmul.f32 %v1825, %v1268
    %1829 = vrot.lane.b32.xlu0 %v1827, 64
    %v1830 = vpop.permute.xlu0 %1829
    %v1832 = vadd.f32 %v1818, %v1830
    %v1833 = vmul.f32 %v1832, %v1418
    %s1834 = scalar_lea.vmem %s10, 64
    %v1835 = vld [vmem:[%s1834] sm:$0xff]
    %v1836 = vld [vmem:[%s1834 + $0x8] sm:$0xff]
    %v1837 = vld [vmem:[%s1834 + $0x10] sm:$0xff]
    %v1838 = vld [vmem:[%s1834 + $0x18] sm:$0xff]
    %v1839 = vld [vmem:[%s1834 + $0x20] sm:$0xff]
    %v1840 = vld [vmem:[%s1834 + $0x28] sm:$0xff]
    %v1841 = vld [vmem:[%s1834 + $0x30] sm:$0xff]
    %v1842 = vld [vmem:[%s1834 + $0x38] sm:$0xff]
    %1844 = vrot.lane.b32.xlu0 %v1833, 64
    %v1845 = vpop.permute.xlu0 %1844
    %v1846 = vsel %vm395, %v1845, 0
    %1848 = vmatprep.subr.mxu0 0.0
    %1849 = vmatpush1.msra.mxu0 %v1835
    %1850 = vmatprep.subr.mxu0 0.0
    %1851 = vmatpush1.msra.mxu0 %v1836
    %1852 = vmatprep.subr.mxu0 0.0
    %1853 = vmatpush1.msra.mxu0 %v1837
    %1854 = vmatprep.subr.mxu0 0.0
    %1855 = vmatpush1.msra.mxu0 %v1838
    %1856 = vmatprep.subr.mxu0 0.0
    %1857 = vmatpush1.msra.mxu0 %v1839
    %1858 = vmatprep.subr.mxu0 0.0
    %1859 = vmatpush1.msra.mxu0 %v1840
    %1860 = vmatprep.subr.mxu0 0.0
    %1861 = vmatpush1.msra.mxu0 %v1841
    %1862 = vmatprep.subr.mxu0 0.0
    %1863 = vmatpush1.msra.mxu0 %v1842
    %1864 = vmatprep.subr.mxu0 0.0
    %1865 = vmatpush1.msra.mxu0 0.0
    %1866 = vmatprep.subr.mxu0 0.0
    %1867 = vmatpush1.msra.mxu0 0.0
    %1868 = vmatprep.subr.mxu0 0.0
    %1869 = vmatpush1.msra.mxu0 0.0
    %1870 = vmatprep.subr.mxu0 0.0
    %1871 = vmatpush1.msra.mxu0 0.0
    %1872 = vmatprep.subr.mxu0 0.0
    %1873 = vmatpush1.msra.mxu0 0.0
    %1874 = vmatprep.subr.mxu0 0.0
    %1875 = vmatpush1.msra.mxu0 0.0
    %1876 = vmatprep.subr.mxu0 0.0
    %1877 = vmatpush1.msra.mxu0 0.0
    %1878 = vmatprep.subr.mxu0 0.0
    %1879 = vmatpush1.msra.mxu0 0.0
    %1880 = vmatprep.subr.mxu0 0.0
    %1881 = vmatpush1.msra.mxu0 0.0
    %1882 = vmatprep.subr.mxu0 0.0
    %1883 = vmatpush1.msra.mxu0 0.0
    %1884 = vmatprep.subr.mxu0 0.0
    %1885 = vmatpush1.msra.mxu0 0.0
    %1886 = vmatprep.subr.mxu0 0.0
    %1887 = vmatpush1.msra.mxu0 0.0
    %1888 = vmatprep.subr.mxu0 0.0
    %1889 = vmatpush1.msra.mxu0 0.0
    %1890 = vmatprep.subr.mxu0 0.0
    %1891 = vmatpush1.msra.mxu0 0.0
    %1892 = vmatprep.subr.mxu0 0.0
    %1893 = vmatpush1.msra.mxu0 0.0
    %1894 = vmatprep.subr.mxu0 0.0
    %1895 = vmatpush1.msra.mxu0 0.0
    %1896 = vmatprep.subr.mxu0 0.0
    %1897 = vmatpush1.msra.mxu0 0.0
    %1898 = vmatprep.subr.mxu0 0.0
    %1899 = vmatpush1.msra.mxu0 0.0
    %1900 = vmatprep.subr.mxu0 0.0
    %1901 = vmatpush1.msra.mxu0 0.0
    %1902 = vmatprep.subr.mxu0 0.0
    %1903 = vmatpush1.msra.mxu0 0.0
    %1904 = vmatprep.subr.mxu0 0.0
    %1905 = vmatpush1.msra.mxu0 0.0
    %1906 = vmatprep.subr.mxu0 0.0
    %1907 = vmatpush1.msra.mxu0 0.0
    %1908 = vmatprep.subr.mxu0 0.0
    %1909 = vmatpush1.msra.mxu0 0.0
    %1910 = vmatprep.subr.mxu0 0.0
    %1911 = vmatpush1.msra.mxu0 0.0
    %1912 = vmatprep.mubr.f32.mxu0 0.0
    %1913 = vmatmul.mubr.f32.gmra.mrb[0].mxu0 %v1846
    %v1914 = vpop.f32.mrb[0].mxu0
    %v1915 = vadd.f32 %v1054, %v1914
    %v1916 = vpop.f32.mrb[0].mxu0
    %1917 = vdwg.mxu0
    %v1918 = vmul.f32 %v1915, %v1915
    %v1919 = vsel %vm164, %v1918, 0.0
    %1920 = vadd.xlane.f32.xlu0 %v1919
    %v1921 = vpop.xlane.xlu0 %1920
    %v1922 = vmul.f32 %v1921, %v168
    %v1923 = vadd.f32 %v1922, 1e-05
    %v1924 = vrsqrt.pop %v1923
    %v1925 = vmul.f32 %v1915, %v1924
    %v1926 = vld [vmem:[%s11] sm:$0xff]
    %v1927 = vld [vmem:[%s11 + $0x8] sm:$0xff]
    %v1928 = vld [vmem:[%s11 + $0x10] sm:$0xff]
    %v1929 = vld [vmem:[%s11 + $0x18] sm:$0xff]
    %v1930 = vld [vmem:[%s11 + $0x20] sm:$0xff]
    %v1931 = vld [vmem:[%s11 + $0x28] sm:$0xff]
    %v1932 = vld [vmem:[%s11 + $0x30] sm:$0xff]
    %v1933 = vld [vmem:[%s11 + $0x38] sm:$0xff]
    %v1935 = vsel %vm164, %v1925, 0
    %1937 = vmatprep.subr.mxu0 %v1927
    %1938 = vmatpush1.msra.mxu0 %v1926
    %1939 = vmatprep.subr.mxu0 %v1929
    %1940 = vmatpush1.msra.mxu0 %v1928
    %1941 = vmatprep.subr.mxu0 %v1931
    %1942 = vmatpush1.msra.mxu0 %v1930
    %1943 = vmatprep.subr.mxu0 %v1933
    %1944 = vmatpush1.msra.mxu0 %v1932
    %1945 = vmatprep.subr.mxu0 0.0
    %1946 = vmatpush1.msra.mxu0 0.0
    %1947 = vmatprep.subr.mxu0 0.0
    %1948 = vmatpush1.msra.mxu0 0.0
    %1949 = vmatprep.subr.mxu0 0.0
    %1950 = vmatpush1.msra.mxu0 0.0
    %1951 = vmatprep.subr.mxu0 0.0
    %1952 = vmatpush1.msra.mxu0 0.0
    %1953 = vmatprep.subr.mxu0 0.0
    %1954 = vmatpush1.msra.mxu0 0.0
    %1955 = vmatprep.subr.mxu0 0.0
    %1956 = vmatpush1.msra.mxu0 0.0
    %1957 = vmatprep.subr.mxu0 0.0
    %1958 = vmatpush1.msra.mxu0 0.0
    %1959 = vmatprep.subr.mxu0 0.0
    %1960 = vmatpush1.msra.mxu0 0.0
    %1961 = vmatprep.subr.mxu0 0.0
    %1962 = vmatpush1.msra.mxu0 0.0
    %1963 = vmatprep.subr.mxu0 0.0
    %1964 = vmatpush1.msra.mxu0 0.0
    %1965 = vmatprep.subr.mxu0 0.0
    %1966 = vmatpush1.msra.mxu0 0.0
    %1967 = vmatprep.subr.mxu0 0.0
    %1968 = vmatpush1.msra.mxu0 0.0
    %1969 = vmatprep.subr.mxu0 0.0
    %1970 = vmatpush1.msra.mxu0 0.0
    %1971 = vmatprep.subr.mxu0 0.0
    %1972 = vmatpush1.msra.mxu0 0.0
    %1973 = vmatprep.subr.mxu0 0.0
    %1974 = vmatpush1.msra.mxu0 0.0
    %1975 = vmatprep.subr.mxu0 0.0
    %1976 = vmatpush1.msra.mxu0 0.0
    %1977 = vmatprep.subr.mxu0 0.0
    %1978 = vmatpush1.msra.mxu0 0.0
    %1979 = vmatprep.subr.mxu0 0.0
    %1980 = vmatpush1.msra.mxu0 0.0
    %1981 = vmatprep.subr.mxu0 0.0
    %1982 = vmatpush1.msra.mxu0 0.0
    %1983 = vmatprep.subr.mxu0 0.0
    %1984 = vmatpush1.msra.mxu0 0.0
    %1985 = vmatprep.subr.mxu0 0.0
    %1986 = vmatpush1.msra.mxu0 0.0
    %1987 = vmatprep.subr.mxu0 0.0
    %1988 = vmatpush1.msra.mxu0 0.0
    %1989 = vmatprep.subr.mxu0 0.0
    %1990 = vmatpush1.msra.mxu0 0.0
    %1991 = vmatprep.subr.mxu0 0.0
    %1992 = vmatpush1.msra.mxu0 0.0
    %1993 = vmatprep.subr.mxu0 0.0
    %1994 = vmatpush1.msra.mxu0 0.0
    %1995 = vmatprep.subr.mxu0 0.0
    %1996 = vmatpush1.msra.mxu0 0.0
    %1997 = vmatprep.subr.mxu0 0.0
    %1998 = vmatpush1.msra.mxu0 0.0
    %1999 = vmatprep.subr.mxu0 0.0
    %2000 = vmatpush1.msra.mxu0 0.0
    %2001 = vmatprep.mubr.f32.mxu0 0.0
    %2002 = vmatmul.mubr.f32.gmra.mrb[0].mxu0 %v1935
    %v2003 = vpop.f32.mrb[0].mxu0
    %v2004 = vadd.f32 0.0, %v2003
    %v2005 = vpop.f32.mrb[0].mxu0
    %v2006 = vadd.f32 0.0, %v2005
    %2007 = vdwg.mxu0
    %2008 = vst [vmem:[#allocation2] sm:$0xff] %v2004
    %2009 = vst [vmem:[#allocation2 + $0x8] sm:$0xff] %v2006
    // Predicated region
    $region50: #{mamba_forward.1} parent=1 // pred_check
      _
    $region51: #{mamba_forward.1} parent=1 // pred_check_branch
      %2011 = sbr.rel (0) target = $region53
    $region52: #{mamba_forward.1} parent=1 // pred_region
      %s2013 = ssub.s32 256, 256
      %2014 = vsyncadd [#allocation3], %s2013
      %s2016 = sshll.u32 [#allocation2], 4
      %s2017 = int_to_ptr.vmem [resolvable:$true] %s2016
      %2019 = dma.vmem_to_hbm [thread:$0]  %s2017, 256, %s12, [#allocation3]
    $region53: #{mamba_forward.1} parent=1 // pred_fallthru
      _
    // Predicated region
    $region54: #{mamba_forward.1} parent=1 // pred_check
      _
    $region55: #{mamba_forward.1} parent=1 // pred_check_branch
      %2021 = sbr.rel (0) target = $region57
    $region56: #{mamba_forward.1} parent=1 // pred_region
      %2022 = dma.done [#allocation3], 256
    $region57: #{mamba_forward.1} parent=1 // pred_fallthru
      _
    %2023 = vsyncpa [#allocation3], 1

</llo_original>
